<compile_context>
chip_gen: v6e
topology: v6e:2x2x1
jax: 0.10.0
libtpu: 0.0.40
codegen_flags: <defaults>
</compile_context>

<pallas_src>
import functools

import jax
import jax.numpy as jnp
from jax import lax
from jax.experimental import pallas as pl
from jax.experimental.pallas import tpu as pltpu

MAX_DIM = 64 * 16
LRELU_SLOPE = 0.01          # nn.LeakyReLU() default used by AttGAN's Conv2dBlock
BN_EPS = 1e-5
VMEM_LIMIT = 32 * 1024 * 1024   # explicit scoped-VMEM budget, safe on v5e/v6e/v7x


def _round_up(a, b):
    return (a + b - 1) // b * b


# ------------------------------ Pallas kernels ------------------------------

def _conv_gemm_stats_kernel(a_ref, w_ref, y_ref, stat_ref, acc_ref):
    """K-tiled conv-as-GEMM: acc += A_tile @ W_tile (bf16 MXU, f32 accumulate).

    On the last K step the f32 accumulator is written out together with the
    per-(M-tile, N-tile) partial batchnorm statistics (sum, sum of squares).
    Padded rows / channels are exact zeros (no bias), so no masking is needed.
    """
    k = pl.program_id(2)

    @pl.when(k == 0)
    def _():
        acc_ref[...] = jnp.zeros_like(acc_ref)

    acc_ref[...] += jnp.dot(a_ref[...], w_ref[...],
                            preferred_element_type=jnp.float32)

    @pl.when(k == pl.num_programs(2) - 1)
    def _():
        acc = acc_ref[...]
        y_ref[...] = acc
        # Two plain row-slice stores (no concatenate / cross-vreg shuffle).
        stat_ref[0:1, :] = jnp.sum(acc, axis=0, keepdims=True)
        stat_ref[1:2, :] = jnp.sum(acc * acc, axis=0, keepdims=True)


def _bn_lrelu_kernel(y_ref, scale_ref, shift_ref, o_ref, *, slope):
    """Folded batchnorm affine + LeakyReLU, elementwise, in-place on y."""
    z = y_ref[...] * scale_ref[...] + shift_ref[...]
    o_ref[...] = jnp.where(z > 0, z, slope * z)


# ------------------------------- layer wrapper -------------------------------

def _im2col_nhwc(x, kh=4, kw=4, stride=2, pad=1):
    """(N,H,W,C) -> (N*Ho*Wo, kh*kw*C) patches, tap-major / channel-minor."""
    N, H, W, C = x.shape
    Ho = (H + 2 * pad - kh) // stride + 1
    Wo = (W + 2 * pad - kw) // stride + 1
    xp = jnp.pad(x, ((0, 0), (pad, pad), (pad, pad), (0, 0)))
    taps = []
    for di in range(kh):
        for dj in range(kw):
            taps.append(xp[:, di:di + stride * Ho:stride,
                           dj:dj + stride * Wo:stride, :])
    patches = jnp.stack(taps, axis=3)                       # (N,Ho,Wo,16,C)
    return patches.reshape(N * Ho * Wo, kh * kw * C), Ho, Wo


def conv2d_block(x_nhwc, weight, bias, gamma, beta):
    """Conv(4x4,s=2,p=1) + training-mode BatchNorm + LeakyReLU, NHWC in/out.

    `bias` is accepted for interface parity but intentionally NOT applied:
    training-mode BN subtracts the per-channel batch mean, which cancels a
    per-channel conv bias exactly (block output is unchanged).
    """
    del bias
    N, H, W, C = x_nhwc.shape
    Cout = weight.shape[0]
    kh = kw = 4

    # im2col glue (bf16 to halve the materialized patch traffic).
    patches, Ho, Wo = _im2col_nhwc(x_nhwc.astype(jnp.bfloat16), kh, kw)
    M, K = patches.shape

    # Tile sizes: lane-dense N (multiple of 128), K tiled, large M tiles.
    TM = min(512, _round_up(M, 8))
    M_pad = _round_up(M, TM)
    K_pad = _round_up(K, 128)
    TK = 512 if K_pad % 512 == 0 else (256 if K_pad % 256 == 0 else 128)
    Np = _round_up(Cout, 128)
    TN = 256 if Np % 256 == 0 else 128
    nm, nn, nk = M_pad // TM, Np // TN, K_pad // TK

    A = jnp.pad(patches, ((0, M_pad - M), (0, K_pad - K)))          # bf16
    Wm = weight.transpose(2, 3, 1, 0).reshape(K, Cout).astype(jnp.float32)
    Wm = jnp.pad(Wm, ((0, K_pad - K), (0, Np - Cout))).astype(jnp.bfloat16)

    y, stats = pl.pallas_call(
        _conv_gemm_stats_kernel,
        grid=(nm, nn, nk),
        in_specs=[
            pl.BlockSpec((TM, TK), lambda i, j, k: (i, k)),
            pl.BlockSpec((TK, TN), lambda i, j, k: (k, j)),
        ],
        out_specs=[
            pl.BlockSpec((TM, TN), lambda i, j, k: (i, j)),
            pl.BlockSpec((None, 2, TN), lambda i, j, k: (i, 0, j)),
        ],
        out_shape=[
            jax.ShapeDtypeStruct((M_pad, Np), jnp.float32),
            jax.ShapeDtypeStruct((nm, 2, Np), jnp.float32),
        ],
        scratch_shapes=[pltpu.VMEM((TM, TN), jnp.float32)],
        compiler_params=pltpu.CompilerParams(
            dimension_semantics=("parallel", "parallel", "arbitrary"),
            vmem_limit_bytes=VMEM_LIMIT),
    )(A, Wm)

    # Reduce per-tile partials -> batch statistics (training-mode BatchNorm2d,
    # biased variance).  Single-pass E[x^2]-E[x]^2 in f32; for production-size
    # M consider a compensated / two-pass variance.
    ssum = jnp.sum(stats[:, 0, :], axis=0)
    ssq = jnp.sum(stats[:, 1, :], axis=0)
    mean = ssum / M
    var = jnp.maximum(ssq / M - mean * mean, 0.0)
    gamma_p = jnp.pad(gamma.astype(jnp.float32), (0, Np - Cout),
                      constant_values=1.0)
    beta_p = jnp.pad(beta.astype(jnp.float32), (0, Np - Cout))
    scale = gamma_p * lax.rsqrt(var + BN_EPS)
    shift = beta_p - mean * scale

    # Folded BN + LeakyReLU, in-place on y (aliased), lane-dense big tiles.
    TM2 = TM
    while TM2 < M_pad and TM2 * 2 <= 1024 and M_pad % (TM2 * 2) == 0:
        TM2 *= 2

    out = pl.pallas_call(
        functools.partial(_bn_lrelu_kernel, slope=LRELU_SLOPE),
        grid=(M_pad // TM2,),
        in_specs=[
            pl.BlockSpec((TM2, Np), lambda i: (i, 0)),
            pl.BlockSpec((1, Np), lambda i: (0, 0)),
            pl.BlockSpec((1, Np), lambda i: (0, 0)),
        ],
        out_specs=pl.BlockSpec((TM2, Np), lambda i: (i, 0)),
        out_shape=jax.ShapeDtypeStruct((M_pad, Np), jnp.float32),
        input_output_aliases={0: 0},
        compiler_params=pltpu.CompilerParams(
            dimension_semantics=("parallel",),
            vmem_limit_bytes=VMEM_LIMIT),
    )(y, scale.reshape(1, Np), shift.reshape(1, Np))

    return out[:M, :Cout].reshape(N, Ho, Wo, Cout)


# -------------------------------- Encoder model -------------------------------

def init_encoder_params(key, enc_dim=8, enc_layers=3, n_in=3):
    """Deterministic synthetic parameters mirroring Encoder.__init__ shapes."""
    params = []
    for i in range(enc_layers):
        n_out = min(enc_dim * 2 ** i, MAX_DIM)
        key, k_w, k_b = jax.random.split(key, 3)
        fan_in = n_in * 4 * 4
        w = jax.random.normal(k_w, (n_out, n_in, 4, 4), jnp.float32) / jnp.sqrt(fan_in)
        b = jax.random.normal(k_b, (n_out,), jnp.float32) * 0.01
        gamma = jnp.ones((n_out,), jnp.float32)
        beta = jnp.zeros((n_out,), jnp.float32)
        params.append((w, b, gamma, beta))
        n_in = n_out
    return params


def _encoder_forward(params, x_nchw):
    """Matches Encoder.forward: returns the list of intermediate features (NCHW)."""
    z = jnp.transpose(x_nchw, (0, 2, 3, 1))     # NHWC internally
    zs = []
    for (w, b, g, be) in params:
        z = conv2d_block(z, w, b, g, be)
        zs.append(z)
    return [jnp.transpose(f, (0, 3, 1, 2)) for f in zs]   # NCHW at the boundary


encoder_forward = jax.jit(_encoder_forward)


if __name__ == "__main__":
    key = jax.random.PRNGKey(0)
    key, k_x, k_p = jax.random.split(key, 3)

    # Small config consistent with the module: 3 input channels, NCHW input.
    enc_dim, enc_layers = 8, 3
    x = jax.random.normal(k_x, (2, 3, 16, 16), jnp.float32)
    params = init_encoder_params(k_p, enc_dim=enc_dim, enc_layers=enc_layers, n_in=3)

    zs = encoder_forward(params, x)
    zs = [jax.block_until_ready(z) for z in zs]

    # Sanity checks on shapes (channels double, spatial halves each layer).
    expected = [(2, 8, 8, 8), (2, 16, 4, 4), (2, 32, 2, 2)]
    assert [tuple(z.shape) for z in zs] == expected, [z.shape for z in zs]
    assert all(bool(jnp.all(jnp.isfinite(z))) for z in zs)

    print("KERNEL_OK")
</pallas_src>

<mosaic_0001>
module attributes {stable_mosaic.version = 11 : i64} {
  func.func @_conv_gemm_stats_kernel(%arg0: i32, %arg1: i32, %arg2: i32, %arg3: memref<128x128xbf16, #tpu.memory_space<vmem>>, %arg4: memref<128x128xbf16, #tpu.memory_space<vmem>>, %arg5: memref<128x128xf32, #tpu.memory_space<vmem>>, %arg6: memref<1x2x128xf32, #tpu.memory_space<vmem>>, %arg7: memref<128x128xf32, #tpu.memory_space<vmem>>) attributes {dimension_semantics = [#tpu.dimension_semantics<parallel>, #tpu.dimension_semantics<parallel>, #tpu.dimension_semantics<arbitrary>], iteration_bounds = array<i64: 1, 1, 1>, scalar_prefetch = 0 : i64, scratch_operands = 1 : i64, tpu.core_type = #tpu.core_type<tc>, window_params = [{transform_indices = @transform_0, window_bounds = array<i64: 128, 128>}, {transform_indices = @transform_1, window_bounds = array<i64: 128, 128>}, {transform_indices = @transform_2, window_bounds = array<i64: 128, 128>}, {transform_indices = @transform_3, window_bounds = array<i64: 1, 2, 128>}]} {
    %c0_i32 = arith.constant 0 : i32
    %0 = arith.cmpi eq, %arg2, %c0_i32 : i32
    %1 = arith.extui %0 : i1 to i32
    %c0_i32_0 = arith.constant 0 : i32
    %2 = arith.cmpi ne, %1, %c0_i32_0 : i32
    scf.if %2 {
      %cst_10 = arith.constant 0.000000e+00 : f32
      %12 = vector.broadcast %cst_10 : f32 to vector<128x128xf32>
      %c0_11 = arith.constant 0 : index
      %c0_12 = arith.constant 0 : index
      %13 = vector.load %arg7[%c0_11, %c0_12] : memref<128x128xf32, #tpu.memory_space<vmem>>, vector<128x128xf32>
      tpu.vector_store %arg7[%c0_11, %c0_12], %12 {strides = array<i32>} : memref<128x128xf32, #tpu.memory_space<vmem>>, vector<128x128xf32>,
    } else {
    }
    %c0 = arith.constant 0 : index
    %c0_1 = arith.constant 0 : index
    %3 = vector.load %arg7[%c0, %c0_1] : memref<128x128xf32, #tpu.memory_space<vmem>>, vector<128x128xf32>
    %c0_2 = arith.constant 0 : index
    %c0_3 = arith.constant 0 : index
    %4 = vector.load %arg3[%c0_2, %c0_3] : memref<128x128xbf16, #tpu.memory_space<vmem>>, vector<128x128xbf16>
    %c0_4 = arith.constant 0 : index
    %c0_5 = arith.constant 0 : index
    %5 = vector.load %arg4[%c0_4, %c0_5] : memref<128x128xbf16, #tpu.memory_space<vmem>>, vector<128x128xbf16>
    %cst = arith.constant dense<0.000000e+00> : vector<128x128xf32>
    %6 = tpu.matmul %4, %5, %cst {dimension_numbers = #tpu.dot_dimension_numbers<[1], [0], [0], [1], [0, 0, 1, 1], [], []>} : vector<128x128xbf16>, vector<128x128xbf16>, vector<128x128xf32> -> vector<128x128xf32>
    %7 = arith.addf %3, %6 : vector<128x128xf32>
    %c0_6 = arith.constant 0 : index
    %c0_7 = arith.constant 0 : index
    %8 = vector.load %arg7[%c0_6, %c0_7] : memref<128x128xf32, #tpu.memory_space<vmem>>, vector<128x128xf32>
    tpu.vector_store %arg7[%c0_6, %c0_7], %7 {strides = array<i32>} : memref<128x128xf32, #tpu.memory_space<vmem>>, vector<128x128xf32>,
    %c0_i32_8 = arith.constant 0 : i32
    %9 = arith.cmpi eq, %arg2, %c0_i32_8 : i32
    %10 = arith.extui %9 : i1 to i32
    %c0_i32_9 = arith.constant 0 : i32
    %11 = arith.cmpi ne, %10, %c0_i32_9 : i32
    scf.if %11 {
      %c0_10 = arith.constant 0 : index
      %c0_11 = arith.constant 0 : index
      %12 = vector.load %arg7[%c0_10, %c0_11] : memref<128x128xf32, #tpu.memory_space<vmem>>, vector<128x128xf32>
      %c0_12 = arith.constant 0 : index
      %c0_13 = arith.constant 0 : index
      %13 = vector.load %arg5[%c0_12, %c0_13] : memref<128x128xf32, #tpu.memory_space<vmem>>, vector<128x128xf32>
      tpu.vector_store %arg5[%c0_12, %c0_13], %12 {strides = array<i32>} : memref<128x128xf32, #tpu.memory_space<vmem>>, vector<128x128xf32>,
      %cst_14 = arith.constant dense<0.000000e+00> : vector<128xf32>
      %14 = vector.multi_reduction <add>, %12, %cst_14 [0] : vector<128x128xf32> to vector<128xf32>
      %15 = vector.shape_cast %14 : vector<128xf32> to vector<1x128xf32>
      %c0_15 = arith.constant 0 : index
      %c0_16 = arith.constant 0 : index
      %c0_17 = arith.constant 0 : index
      %16 = vector.load %arg6[%c0_15, %c0_16, %c0_17] : memref<1x2x128xf32, #tpu.memory_space<vmem>>, vector<1x1x128xf32>
      %17 = vector.shape_cast %16 : vector<1x1x128xf32> to vector<1x128xf32>
      %18 = vector.shape_cast %15 : vector<1x128xf32> to vector<1x1x128xf32>
      tpu.vector_store %arg6[%c0_15, %c0_16, %c0_17], %18 {strides = array<i32>} : memref<1x2x128xf32, #tpu.memory_space<vmem>>, vector<1x1x128xf32>,
      %19 = arith.mulf %12, %12 : vector<128x128xf32>
      %cst_18 = arith.constant dense<0.000000e+00> : vector<128xf32>
      %20 = vector.multi_reduction <add>, %19, %cst_18 [0] : vector<128x128xf32> to vector<128xf32>
      %21 = vector.shape_cast %20 : vector<128xf32> to vector<1x128xf32>
      %c0_19 = arith.constant 0 : index
      %c1 = arith.constant 1 : index
      %c0_20 = arith.constant 0 : index
      %22 = vector.load %arg6[%c0_19, %c1, %c0_20] : memref<1x2x128xf32, #tpu.memory_space<vmem>>, vector<1x1x128xf32>
      %23 = vector.shape_cast %22 : vector<1x1x128xf32> to vector<1x128xf32>
      %24 = vector.shape_cast %21 : vector<1x128xf32> to vector<1x1x128xf32>
      tpu.vector_store %arg6[%c0_19, %c1, %c0_20], %24 {strides = array<i32>} : memref<1x2x128xf32, #tpu.memory_space<vmem>>, vector<1x1x128xf32>,
    } else {
    }
    return
  }
  func.func @transform_0(%arg0: i32, %arg1: i32, %arg2: i32) -> (i32, i32) {
    %c0_i32 = arith.constant 0 : i32
    return %arg0, %arg2 : i32, i32
  }
  func.func @transform_1(%arg0: i32, %arg1: i32, %arg2: i32) -> (i32, i32) {
    %c0_i32 = arith.constant 0 : i32
    return %arg2, %arg1 : i32, i32
  }
  func.func @transform_2(%arg0: i32, %arg1: i32, %arg2: i32) -> (i32, i32) {
    %c0_i32 = arith.constant 0 : i32
    return %arg0, %arg1 : i32, i32
  }
  func.func @transform_3(%arg0: i32, %arg1: i32, %arg2: i32) -> (i32, i32, i32) {
    %c0_i32 = arith.constant 0 : i32
    %c0_i32_0 = arith.constant 0 : i32
    return %arg0, %c0_i32, %arg1 : i32, i32, i32
  }
}

module attributes {stable_mosaic.version = 11 : i64} {
  func.func @_bn_lrelu_kernel(%arg0: i32, %arg1: memref<128x128xf32, #tpu.memory_space<vmem>>, %arg2: memref<1x128xf32, #tpu.memory_space<vmem>>, %arg3: memref<1x128xf32, #tpu.memory_space<vmem>>, %arg4: memref<128x128xf32, #tpu.memory_space<vmem>>) attributes {dimension_semantics = [#tpu.dimension_semantics<parallel>], iteration_bounds = array<i64: 1>, scalar_prefetch = 0 : i64, scratch_operands = 0 : i64, tpu.core_type = #tpu.core_type<tc>, window_params = [{transform_indices = @transform_0, window_bounds = array<i64: 128, 128>}, {pipeline_mode = #tpu.pipeline_mode<synchronous>, transform_indices = @transform_1, window_bounds = array<i64: 1, 128>}, {pipeline_mode = #tpu.pipeline_mode<synchronous>, transform_indices = @transform_2, window_bounds = array<i64: 1, 128>}, {transform_indices = @transform_3, window_bounds = array<i64: 128, 128>}]} {
    %c0 = arith.constant 0 : index
    %c0_0 = arith.constant 0 : index
    %0 = vector.load %arg1[%c0, %c0_0] : memref<128x128xf32, #tpu.memory_space<vmem>>, vector<128x128xf32>
    %c0_1 = arith.constant 0 : index
    %c0_2 = arith.constant 0 : index
    %1 = vector.load %arg2[%c0_1, %c0_2] : memref<1x128xf32, #tpu.memory_space<vmem>>, vector<1x128xf32>
    %2 = vector.broadcast %1 : vector<1x128xf32> to vector<128x128xf32>
    %3 = arith.mulf %0, %2 : vector<128x128xf32>
    %c0_3 = arith.constant 0 : index
    %c0_4 = arith.constant 0 : index
    %4 = vector.load %arg3[%c0_3, %c0_4] : memref<1x128xf32, #tpu.memory_space<vmem>>, vector<1x128xf32>
    %5 = vector.broadcast %4 : vector<1x128xf32> to vector<128x128xf32>
    %6 = arith.addf %3, %5 : vector<128x128xf32>
    %cst = arith.constant 0.000000e+00 : f32
    %7 = vector.broadcast %cst : f32 to vector<128x128xf32>
    %8 = arith.cmpf ogt, %6, %7 : vector<128x128xf32>
    %cst_5 = arith.constant 0.00999999977 : f32
    %9 = vector.broadcast %cst_5 : f32 to vector<128x128xf32>
    %10 = arith.mulf %9, %6 : vector<128x128xf32>
    %11 = arith.select %8, %6, %10 : vector<128x128xi1>, vector<128x128xf32>
    %c0_6 = arith.constant 0 : index
    %c0_7 = arith.constant 0 : index
    %12 = vector.load %arg4[%c0_6, %c0_7] : memref<128x128xf32, #tpu.memory_space<vmem>>, vector<128x128xf32>
    tpu.vector_store %arg4[%c0_6, %c0_7], %11 {strides = array<i32>} : memref<128x128xf32, #tpu.memory_space<vmem>>, vector<128x128xf32>,
    return
  }
  func.func @transform_0(%arg0: i32) -> (i32, i32) {
    %c0_i32 = arith.constant 0 : i32
    %c0_i32_0 = arith.constant 0 : i32
    return %arg0, %c0_i32 : i32, i32
  }
  func.func @transform_1(%arg0: i32) -> (i32, i32) {
    %c0_i32 = arith.constant 0 : i32
    %c0_i32_0 = arith.constant 0 : i32
    %c0_i32_1 = arith.constant 0 : i32
    return %c0_i32, %c0_i32_0 : i32, i32
  }
  func.func @transform_2(%arg0: i32) -> (i32, i32) {
    %c0_i32 = arith.constant 0 : i32
    %c0_i32_0 = arith.constant 0 : i32
    %c0_i32_1 = arith.constant 0 : i32
    return %c0_i32, %c0_i32_0 : i32, i32
  }
  func.func @transform_3(%arg0: i32) -> (i32, i32) {
    %c0_i32 = arith.constant 0 : i32
    %c0_i32_0 = arith.constant 0 : i32
    return %arg0, %c0_i32 : i32, i32
  }
}

module attributes {stable_mosaic.version = 11 : i64} {
  func.func @_bn_lrelu_kernel(%arg0: i32, %arg1: memref<32x128xf32, #tpu.memory_space<vmem>>, %arg2: memref<1x128xf32, #tpu.memory_space<vmem>>, %arg3: memref<1x128xf32, #tpu.memory_space<vmem>>, %arg4: memref<32x128xf32, #tpu.memory_space<vmem>>) attributes {dimension_semantics = [#tpu.dimension_semantics<parallel>], iteration_bounds = array<i64: 1>, scalar_prefetch = 0 : i64, scratch_operands = 0 : i64, tpu.core_type = #tpu.core_type<tc>, window_params = [{transform_indices = @transform_0, window_bounds = array<i64: 32, 128>}, {pipeline_mode = #tpu.pipeline_mode<synchronous>, transform_indices = @transform_1, window_bounds = array<i64: 1, 128>}, {pipeline_mode = #tpu.pipeline_mode<synchronous>, transform_indices = @transform_2, window_bounds = array<i64: 1, 128>}, {transform_indices = @transform_3, window_bounds = array<i64: 32, 128>}]} {
    %c0 = arith.constant 0 : index
    %c0_0 = arith.constant 0 : index
    %0 = vector.load %arg1[%c0, %c0_0] : memref<32x128xf32, #tpu.memory_space<vmem>>, vector<32x128xf32>
    %c0_1 = arith.constant 0 : index
    %c0_2 = arith.constant 0 : index
    %1 = vector.load %arg2[%c0_1, %c0_2] : memref<1x128xf32, #tpu.memory_space<vmem>>, vector<1x128xf32>
    %2 = vector.broadcast %1 : vector<1x128xf32> to vector<32x128xf32>
    %3 = arith.mulf %0, %2 : vector<32x128xf32>
    %c0_3 = arith.constant 0 : index
    %c0_4 = arith.constant 0 : index
    %4 = vector.load %arg3[%c0_3, %c0_4] : memref<1x128xf32, #tpu.memory_space<vmem>>, vector<1x128xf32>
    %5 = vector.broadcast %4 : vector<1x128xf32> to vector<32x128xf32>
    %6 = arith.addf %3, %5 : vector<32x128xf32>
    %cst = arith.constant 0.000000e+00 : f32
    %7 = vector.broadcast %cst : f32 to vector<32x128xf32>
    %8 = arith.cmpf ogt, %6, %7 : vector<32x128xf32>
    %cst_5 = arith.constant 0.00999999977 : f32
    %9 = vector.broadcast %cst_5 : f32 to vector<32x128xf32>
    %10 = arith.mulf %9, %6 : vector<32x128xf32>
    %11 = arith.select %8, %6, %10 : vector<32x128xi1>, vector<32x128xf32>
    %c0_6 = arith.constant 0 : index
    %c0_7 = arith.constant 0 : index
    %12 = vector.load %arg4[%c0_6, %c0_7] : memref<32x128xf32, #tpu.memory_space<vmem>>, vector<32x128xf32>
    tpu.vector_store %arg4[%c0_6, %c0_7], %11 {strides = array<i32>} : memref<32x128xf32, #tpu.memory_space<vmem>>, vector<32x128xf32>,
    return
  }
  func.func @transform_0(%arg0: i32) -> (i32, i32) {
    %c0_i32 = arith.constant 0 : i32
    %c0_i32_0 = arith.constant 0 : i32
    return %arg0, %c0_i32 : i32, i32
  }
  func.func @transform_1(%arg0: i32) -> (i32, i32) {
    %c0_i32 = arith.constant 0 : i32
    %c0_i32_0 = arith.constant 0 : i32
    %c0_i32_1 = arith.constant 0 : i32
    return %c0_i32, %c0_i32_0 : i32, i32
  }
  func.func @transform_2(%arg0: i32) -> (i32, i32) {
    %c0_i32 = arith.constant 0 : i32
    %c0_i32_0 = arith.constant 0 : i32
    %c0_i32_1 = arith.constant 0 : i32
    return %c0_i32, %c0_i32_0 : i32, i32
  }
  func.func @transform_3(%arg0: i32) -> (i32, i32) {
    %c0_i32 = arith.constant 0 : i32
    %c0_i32_0 = arith.constant 0 : i32
    return %arg0, %c0_i32 : i32, i32
  }
}

module attributes {stable_mosaic.version = 11 : i64} {
  func.func @_conv_gemm_stats_kernel(%arg0: i32, %arg1: i32, %arg2: i32, %arg3: memref<32x128xbf16, #tpu.memory_space<vmem>>, %arg4: memref<128x128xbf16, #tpu.memory_space<vmem>>, %arg5: memref<32x128xf32, #tpu.memory_space<vmem>>, %arg6: memref<1x2x128xf32, #tpu.memory_space<vmem>>, %arg7: memref<32x128xf32, #tpu.memory_space<vmem>>) attributes {dimension_semantics = [#tpu.dimension_semantics<parallel>, #tpu.dimension_semantics<parallel>, #tpu.dimension_semantics<arbitrary>], iteration_bounds = array<i64: 1, 1, 1>, scalar_prefetch = 0 : i64, scratch_operands = 1 : i64, tpu.core_type = #tpu.core_type<tc>, window_params = [{transform_indices = @transform_0, window_bounds = array<i64: 32, 128>}, {transform_indices = @transform_1, window_bounds = array<i64: 128, 128>}, {transform_indices = @transform_2, window_bounds = array<i64: 32, 128>}, {transform_indices = @transform_3, window_bounds = array<i64: 1, 2, 128>}]} {
    %c0_i32 = arith.constant 0 : i32
    %0 = arith.cmpi eq, %arg2, %c0_i32 : i32
    %1 = arith.extui %0 : i1 to i32
    %c0_i32_0 = arith.constant 0 : i32
    %2 = arith.cmpi ne, %1, %c0_i32_0 : i32
    scf.if %2 {
      %cst_10 = arith.constant 0.000000e+00 : f32
      %12 = vector.broadcast %cst_10 : f32 to vector<32x128xf32>
      %c0_11 = arith.constant 0 : index
      %c0_12 = arith.constant 0 : index
      %13 = vector.load %arg7[%c0_11, %c0_12] : memref<32x128xf32, #tpu.memory_space<vmem>>, vector<32x128xf32>
      tpu.vector_store %arg7[%c0_11, %c0_12], %12 {strides = array<i32>} : memref<32x128xf32, #tpu.memory_space<vmem>>, vector<32x128xf32>,
    } else {
    }
    %c0 = arith.constant 0 : index
    %c0_1 = arith.constant 0 : index
    %3 = vector.load %arg7[%c0, %c0_1] : memref<32x128xf32, #tpu.memory_space<vmem>>, vector<32x128xf32>
    %c0_2 = arith.constant 0 : index
    %c0_3 = arith.constant 0 : index
    %4 = vector.load %arg3[%c0_2, %c0_3] : memref<32x128xbf16, #tpu.memory_space<vmem>>, vector<32x128xbf16>
    %c0_4 = arith.constant 0 : index
    %c0_5 = arith.constant 0 : index
    %5 = vector.load %arg4[%c0_4, %c0_5] : memref<128x128xbf16, #tpu.memory_space<vmem>>, vector<128x128xbf16>
    %cst = arith.constant dense<0.000000e+00> : vector<32x128xf32>
    %6 = tpu.matmul %4, %5, %cst {dimension_numbers = #tpu.dot_dimension_numbers<[1], [0], [0], [1], [0, 0, 1, 1], [], []>} : vector<32x128xbf16>, vector<128x128xbf16>, vector<32x128xf32> -> vector<32x128xf32>
    %7 = arith.addf %3, %6 : vector<32x128xf32>
    %c0_6 = arith.constant 0 : index
    %c0_7 = arith.constant 0 : index
    %8 = vector.load %arg7[%c0_6, %c0_7] : memref<32x128xf32, #tpu.memory_space<vmem>>, vector<32x128xf32>
    tpu.vector_store %arg7[%c0_6, %c0_7], %7 {strides = array<i32>} : memref<32x128xf32, #tpu.memory_space<vmem>>, vector<32x128xf32>,
    %c0_i32_8 = arith.constant 0 : i32
    %9 = arith.cmpi eq, %arg2, %c0_i32_8 : i32
    %10 = arith.extui %9 : i1 to i32
    %c0_i32_9 = arith.constant 0 : i32
    %11 = arith.cmpi ne, %10, %c0_i32_9 : i32
    scf.if %11 {
      %c0_10 = arith.constant 0 : index
      %c0_11 = arith.constant 0 : index
      %12 = vector.load %arg7[%c0_10, %c0_11] : memref<32x128xf32, #tpu.memory_space<vmem>>, vector<32x128xf32>
      %c0_12 = arith.constant 0 : index
      %c0_13 = arith.constant 0 : index
      %13 = vector.load %arg5[%c0_12, %c0_13] : memref<32x128xf32, #tpu.memory_space<vmem>>, vector<32x128xf32>
      tpu.vector_store %arg5[%c0_12, %c0_13], %12 {strides = array<i32>} : memref<32x128xf32, #tpu.memory_space<vmem>>, vector<32x128xf32>,
      %cst_14 = arith.constant dense<0.000000e+00> : vector<128xf32>
      %14 = vector.multi_reduction <add>, %12, %cst_14 [0] : vector<32x128xf32> to vector<128xf32>
      %15 = vector.shape_cast %14 : vector<128xf32> to vector<1x128xf32>
      %c0_15 = arith.constant 0 : index
      %c0_16 = arith.constant 0 : index
      %c0_17 = arith.constant 0 : index
      %16 = vector.load %arg6[%c0_15, %c0_16, %c0_17] : memref<1x2x128xf32, #tpu.memory_space<vmem>>, vector<1x1x128xf32>
      %17 = vector.shape_cast %16 : vector<1x1x128xf32> to vector<1x128xf32>
      %18 = vector.shape_cast %15 : vector<1x128xf32> to vector<1x1x128xf32>
      tpu.vector_store %arg6[%c0_15, %c0_16, %c0_17], %18 {strides = array<i32>} : memref<1x2x128xf32, #tpu.memory_space<vmem>>, vector<1x1x128xf32>,
      %19 = arith.mulf %12, %12 : vector<32x128xf32>
      %cst_18 = arith.constant dense<0.000000e+00> : vector<128xf32>
      %20 = vector.multi_reduction <add>, %19, %cst_18 [0] : vector<32x128xf32> to vector<128xf32>
      %21 = vector.shape_cast %20 : vector<128xf32> to vector<1x128xf32>
      %c0_19 = arith.constant 0 : index
      %c1 = arith.constant 1 : index
      %c0_20 = arith.constant 0 : index
      %22 = vector.load %arg6[%c0_19, %c1, %c0_20] : memref<1x2x128xf32, #tpu.memory_space<vmem>>, vector<1x1x128xf32>
      %23 = vector.shape_cast %22 : vector<1x1x128xf32> to vector<1x128xf32>
      %24 = vector.shape_cast %21 : vector<1x128xf32> to vector<1x1x128xf32>
      tpu.vector_store %arg6[%c0_19, %c1, %c0_20], %24 {strides = array<i32>} : memref<1x2x128xf32, #tpu.memory_space<vmem>>, vector<1x1x128xf32>,
    } else {
    }
    return
  }
  func.func @transform_0(%arg0: i32, %arg1: i32, %arg2: i32) -> (i32, i32) {
    %c0_i32 = arith.constant 0 : i32
    return %arg0, %arg2 : i32, i32
  }
  func.func @transform_1(%arg0: i32, %arg1: i32, %arg2: i32) -> (i32, i32) {
    %c0_i32 = arith.constant 0 : i32
    return %arg2, %arg1 : i32, i32
  }
  func.func @transform_2(%arg0: i32, %arg1: i32, %arg2: i32) -> (i32, i32) {
    %c0_i32 = arith.constant 0 : i32
    return %arg0, %arg1 : i32, i32
  }
  func.func @transform_3(%arg0: i32, %arg1: i32, %arg2: i32) -> (i32, i32, i32) {
    %c0_i32 = arith.constant 0 : i32
    %c0_i32_0 = arith.constant 0 : i32
    return %arg0, %c0_i32, %arg1 : i32, i32, i32
  }
}

module attributes {stable_mosaic.version = 11 : i64} {
  func.func @_conv_gemm_stats_kernel(%arg0: i32, %arg1: i32, %arg2: i32, %arg3: memref<8x256xbf16, #tpu.memory_space<vmem>>, %arg4: memref<256x128xbf16, #tpu.memory_space<vmem>>, %arg5: memref<8x128xf32, #tpu.memory_space<vmem>>, %arg6: memref<1x2x128xf32, #tpu.memory_space<vmem>>, %arg7: memref<8x128xf32, #tpu.memory_space<vmem>>) attributes {dimension_semantics = [#tpu.dimension_semantics<parallel>, #tpu.dimension_semantics<parallel>, #tpu.dimension_semantics<arbitrary>], iteration_bounds = array<i64: 1, 1, 1>, scalar_prefetch = 0 : i64, scratch_operands = 1 : i64, tpu.core_type = #tpu.core_type<tc>, window_params = [{transform_indices = @transform_0, window_bounds = array<i64: 8, 256>}, {transform_indices = @transform_1, window_bounds = array<i64: 256, 128>}, {transform_indices = @transform_2, window_bounds = array<i64: 8, 128>}, {transform_indices = @transform_3, window_bounds = array<i64: 1, 2, 128>}]} {
    %c0_i32 = arith.constant 0 : i32
    %0 = arith.cmpi eq, %arg2, %c0_i32 : i32
    %1 = arith.extui %0 : i1 to i32
    %c0_i32_0 = arith.constant 0 : i32
    %2 = arith.cmpi ne, %1, %c0_i32_0 : i32
    scf.if %2 {
      %cst_10 = arith.constant 0.000000e+00 : f32
      %12 = vector.broadcast %cst_10 : f32 to vector<8x128xf32>
      %c0_11 = arith.constant 0 : index
      %c0_12 = arith.constant 0 : index
      %13 = vector.load %arg7[%c0_11, %c0_12] : memref<8x128xf32, #tpu.memory_space<vmem>>, vector<8x128xf32>
      tpu.vector_store %arg7[%c0_11, %c0_12], %12 {strides = array<i32>} : memref<8x128xf32, #tpu.memory_space<vmem>>, vector<8x128xf32>,
    } else {
    }
    %c0 = arith.constant 0 : index
    %c0_1 = arith.constant 0 : index
    %3 = vector.load %arg7[%c0, %c0_1] : memref<8x128xf32, #tpu.memory_space<vmem>>, vector<8x128xf32>
    %c0_2 = arith.constant 0 : index
    %c0_3 = arith.constant 0 : index
    %4 = vector.load %arg3[%c0_2, %c0_3] : memref<8x256xbf16, #tpu.memory_space<vmem>>, vector<8x256xbf16>
    %c0_4 = arith.constant 0 : index
    %c0_5 = arith.constant 0 : index
    %5 = vector.load %arg4[%c0_4, %c0_5] : memref<256x128xbf16, #tpu.memory_space<vmem>>, vector<256x128xbf16>
    %cst = arith.constant dense<0.000000e+00> : vector<8x128xf32>
    %6 = tpu.matmul %4, %5, %cst {dimension_numbers = #tpu.dot_dimension_numbers<[1], [0], [0], [1], [0, 0, 1, 1], [], []>} : vector<8x256xbf16>, vector<256x128xbf16>, vector<8x128xf32> -> vector<8x128xf32>
    %7 = arith.addf %3, %6 : vector<8x128xf32>
    %c0_6 = arith.constant 0 : index
    %c0_7 = arith.constant 0 : index
    %8 = vector.load %arg7[%c0_6, %c0_7] : memref<8x128xf32, #tpu.memory_space<vmem>>, vector<8x128xf32>
    tpu.vector_store %arg7[%c0_6, %c0_7], %7 {strides = array<i32>} : memref<8x128xf32, #tpu.memory_space<vmem>>, vector<8x128xf32>,
    %c0_i32_8 = arith.constant 0 : i32
    %9 = arith.cmpi eq, %arg2, %c0_i32_8 : i32
    %10 = arith.extui %9 : i1 to i32
    %c0_i32_9 = arith.constant 0 : i32
    %11 = arith.cmpi ne, %10, %c0_i32_9 : i32
    scf.if %11 {
      %c0_10 = arith.constant 0 : index
      %c0_11 = arith.constant 0 : index
      %12 = vector.load %arg7[%c0_10, %c0_11] : memref<8x128xf32, #tpu.memory_space<vmem>>, vector<8x128xf32>
      %c0_12 = arith.constant 0 : index
      %c0_13 = arith.constant 0 : index
      %13 = vector.load %arg5[%c0_12, %c0_13] : memref<8x128xf32, #tpu.memory_space<vmem>>, vector<8x128xf32>
      tpu.vector_store %arg5[%c0_12, %c0_13], %12 {strides = array<i32>} : memref<8x128xf32, #tpu.memory_space<vmem>>, vector<8x128xf32>,
      %cst_14 = arith.constant dense<0.000000e+00> : vector<128xf32>
      %14 = vector.multi_reduction <add>, %12, %cst_14 [0] : vector<8x128xf32> to vector<128xf32>
      %15 = vector.shape_cast %14 : vector<128xf32> to vector<1x128xf32>
      %c0_15 = arith.constant 0 : index
      %c0_16 = arith.constant 0 : index
      %c0_17 = arith.constant 0 : index
      %16 = vector.load %arg6[%c0_15, %c0_16, %c0_17] : memref<1x2x128xf32, #tpu.memory_space<vmem>>, vector<1x1x128xf32>
      %17 = vector.shape_cast %16 : vector<1x1x128xf32> to vector<1x128xf32>
      %18 = vector.shape_cast %15 : vector<1x128xf32> to vector<1x1x128xf32>
      tpu.vector_store %arg6[%c0_15, %c0_16, %c0_17], %18 {strides = array<i32>} : memref<1x2x128xf32, #tpu.memory_space<vmem>>, vector<1x1x128xf32>,
      %19 = arith.mulf %12, %12 : vector<8x128xf32>
      %cst_18 = arith.constant dense<0.000000e+00> : vector<128xf32>
      %20 = vector.multi_reduction <add>, %19, %cst_18 [0] : vector<8x128xf32> to vector<128xf32>
      %21 = vector.shape_cast %20 : vector<128xf32> to vector<1x128xf32>
      %c0_19 = arith.constant 0 : index
      %c1 = arith.constant 1 : index
      %c0_20 = arith.constant 0 : index
      %22 = vector.load %arg6[%c0_19, %c1, %c0_20] : memref<1x2x128xf32, #tpu.memory_space<vmem>>, vector<1x1x128xf32>
      %23 = vector.shape_cast %22 : vector<1x1x128xf32> to vector<1x128xf32>
      %24 = vector.shape_cast %21 : vector<1x128xf32> to vector<1x1x128xf32>
      tpu.vector_store %arg6[%c0_19, %c1, %c0_20], %24 {strides = array<i32>} : memref<1x2x128xf32, #tpu.memory_space<vmem>>, vector<1x1x128xf32>,
    } else {
    }
    return
  }
  func.func @transform_0(%arg0: i32, %arg1: i32, %arg2: i32) -> (i32, i32) {
    %c0_i32 = arith.constant 0 : i32
    return %arg0, %arg2 : i32, i32
  }
  func.func @transform_1(%arg0: i32, %arg1: i32, %arg2: i32) -> (i32, i32) {
    %c0_i32 = arith.constant 0 : i32
    return %arg2, %arg1 : i32, i32
  }
  func.func @transform_2(%arg0: i32, %arg1: i32, %arg2: i32) -> (i32, i32) {
    %c0_i32 = arith.constant 0 : i32
    return %arg0, %arg1 : i32, i32
  }
  func.func @transform_3(%arg0: i32, %arg1: i32, %arg2: i32) -> (i32, i32, i32) {
    %c0_i32 = arith.constant 0 : i32
    %c0_i32_0 = arith.constant 0 : i32
    return %arg0, %c0_i32, %arg1 : i32, i32, i32
  }
}

module attributes {stable_mosaic.version = 11 : i64} {
  func.func @_bn_lrelu_kernel(%arg0: i32, %arg1: memref<8x128xf32, #tpu.memory_space<vmem>>, %arg2: memref<1x128xf32, #tpu.memory_space<vmem>>, %arg3: memref<1x128xf32, #tpu.memory_space<vmem>>, %arg4: memref<8x128xf32, #tpu.memory_space<vmem>>) attributes {dimension_semantics = [#tpu.dimension_semantics<parallel>], iteration_bounds = array<i64: 1>, scalar_prefetch = 0 : i64, scratch_operands = 0 : i64, tpu.core_type = #tpu.core_type<tc>, window_params = [{transform_indices = @transform_0, window_bounds = array<i64: 8, 128>}, {pipeline_mode = #tpu.pipeline_mode<synchronous>, transform_indices = @transform_1, window_bounds = array<i64: 1, 128>}, {pipeline_mode = #tpu.pipeline_mode<synchronous>, transform_indices = @transform_2, window_bounds = array<i64: 1, 128>}, {transform_indices = @transform_3, window_bounds = array<i64: 8, 128>}]} {
    %c0 = arith.constant 0 : index
    %c0_0 = arith.constant 0 : index
    %0 = vector.load %arg1[%c0, %c0_0] : memref<8x128xf32, #tpu.memory_space<vmem>>, vector<8x128xf32>
    %c0_1 = arith.constant 0 : index
    %c0_2 = arith.constant 0 : index
    %1 = vector.load %arg2[%c0_1, %c0_2] : memref<1x128xf32, #tpu.memory_space<vmem>>, vector<1x128xf32>
    %2 = vector.broadcast %1 : vector<1x128xf32> to vector<8x128xf32>
    %3 = arith.mulf %0, %2 : vector<8x128xf32>
    %c0_3 = arith.constant 0 : index
    %c0_4 = arith.constant 0 : index
    %4 = vector.load %arg3[%c0_3, %c0_4] : memref<1x128xf32, #tpu.memory_space<vmem>>, vector<1x128xf32>
    %5 = vector.broadcast %4 : vector<1x128xf32> to vector<8x128xf32>
    %6 = arith.addf %3, %5 : vector<8x128xf32>
    %cst = arith.constant 0.000000e+00 : f32
    %7 = vector.broadcast %cst : f32 to vector<8x128xf32>
    %8 = arith.cmpf ogt, %6, %7 : vector<8x128xf32>
    %cst_5 = arith.constant 0.00999999977 : f32
    %9 = vector.broadcast %cst_5 : f32 to vector<8x128xf32>
    %10 = arith.mulf %9, %6 : vector<8x128xf32>
    %11 = arith.select %8, %6, %10 : vector<8x128xi1>, vector<8x128xf32>
    %c0_6 = arith.constant 0 : index
    %c0_7 = arith.constant 0 : index
    %12 = vector.load %arg4[%c0_6, %c0_7] : memref<8x128xf32, #tpu.memory_space<vmem>>, vector<8x128xf32>
    tpu.vector_store %arg4[%c0_6, %c0_7], %11 {strides = array<i32>} : memref<8x128xf32, #tpu.memory_space<vmem>>, vector<8x128xf32>,
    return
  }
  func.func @transform_0(%arg0: i32) -> (i32, i32) {
    %c0_i32 = arith.constant 0 : i32
    %c0_i32_0 = arith.constant 0 : i32
    return %arg0, %c0_i32 : i32, i32
  }
  func.func @transform_1(%arg0: i32) -> (i32, i32) {
    %c0_i32 = arith.constant 0 : i32
    %c0_i32_0 = arith.constant 0 : i32
    %c0_i32_1 = arith.constant 0 : i32
    return %c0_i32, %c0_i32_0 : i32, i32
  }
  func.func @transform_2(%arg0: i32) -> (i32, i32) {
    %c0_i32 = arith.constant 0 : i32
    %c0_i32_0 = arith.constant 0 : i32
    %c0_i32_1 = arith.constant 0 : i32
    return %c0_i32, %c0_i32_0 : i32, i32
  }
  func.func @transform_3(%arg0: i32) -> (i32, i32) {
    %c0_i32 = arith.constant 0 : i32
    %c0_i32_0 = arith.constant 0 : i32
    return %arg0, %c0_i32 : i32, i32
  }
}

</mosaic_0001>

<llo_original>
// kernel: _encoder_forward.7
$region0: #{_encoder_forward.7}
  #allocation0 [shape = 'u32[]', space=smem, size = 0x4, offset = 0x4, fixed_abs, tag = 'smem constant byte address 0x4 - core index']
  #allocation1 [shape = 'u32[144,128]{1,0:T(1,128)}', space=vmem, size = 0x12000, scoped, tag = 'internal scratch']
  %s0 = inlined_call_operand.vmem [shape: f32[128,128], index: 0, kind: input, shape index: {}, may-alias: {0,3}]
  %s1 = inlined_call_operand.vmem [shape: f32[1,128], index: 1, kind: input, shape index: {}]
  %s2 = inlined_call_operand.vmem [shape: f32[1,128], index: 2, kind: input, shape index: {}]
  %s3 = inlined_call_operand.vmem [shape: f32[128,128], index: 3, kind: output, shape index: {}, may-alias: {0,3}]
  %s4 = sld [smem:[#allocation0]]
  $region22: #{_encoder_forward.7} parent=0
    _
  %s6 = ssub.s32 1, %s4
  %s7 = scalar_select 0, %s6, %s4
  // Predicated region
  $region2: #{_encoder_forward.7} parent=0 // pred_check
    _
  $region3: #{_encoder_forward.7} parent=0 // pred_check_branch
    %9 = sbr.rel (0) target = $region5
  $region4: #{_encoder_forward.7} parent=0 // pred_region
    _
  $region5: #{_encoder_forward.7} parent=0 // pred_fallthru
    _
  // Predicated region
  $region6: #{_encoder_forward.7} parent=0 // pred_check
    _
  $region7: #{_encoder_forward.7} parent=0 // pred_check_branch
    %11 = sbr.rel (0) target = $region9
  $region8: #{_encoder_forward.7} parent=0 // pred_region
    _
  $region9: #{_encoder_forward.7} parent=0 // pred_fallthru
    _
  // Predicated region
  $region10: #{_encoder_forward.7} parent=0 // pred_check
    _
  $region11: #{_encoder_forward.7} parent=0 // pred_check_branch
    %13 = sbr.rel (0) target = $region13
  $region12: #{_encoder_forward.7} parent=0 // pred_region
    _
  $region13: #{_encoder_forward.7} parent=0 // pred_fallthru
    _
  %v14 = vld [vmem:[%s0] sm:$0xff]
  %v15 = vld [vmem:[%s0 + $0x8] sm:$0xff]
  %v16 = vld [vmem:[%s0 + $0x10] sm:$0xff]
  %v17 = vld [vmem:[%s0 + $0x18] sm:$0xff]
  %v18 = vld [vmem:[%s0 + $0x20] sm:$0xff]
  %v19 = vld [vmem:[%s0 + $0x28] sm:$0xff]
  %v20 = vld [vmem:[%s0 + $0x30] sm:$0xff]
  %v21 = vld [vmem:[%s0 + $0x38] sm:$0xff]
  %v22 = vld [vmem:[%s0 + $0x40] sm:$0xff]
  %v23 = vld [vmem:[%s0 + $0x48] sm:$0xff]
  %v24 = vld [vmem:[%s0 + $0x50] sm:$0xff]
  %v25 = vld [vmem:[%s0 + $0x58] sm:$0xff]
  %v26 = vld [vmem:[%s0 + $0x60] sm:$0xff]
  %v27 = vld [vmem:[%s0 + $0x68] sm:$0xff]
  %v28 = vld [vmem:[%s0 + $0x70] sm:$0xff]
  %v29 = vld [vmem:[%s0 + $0x78] sm:$0xff]
  %v30 = vld [vmem:[%s1] sm:$0x1]
  %v32 = vlaneseq
  %v33 = vshrl.u32 %v32, 7
  %v34 = vsub.s32 0, %v33
  %v35 = vrot.slane %v30, %v34
  %v37 = vmul.f32 %v14, %v35
  %v38 = vmul.f32 %v15, %v35
  %v39 = vmul.f32 %v16, %v35
  %v40 = vmul.f32 %v17, %v35
  %v41 = vmul.f32 %v18, %v35
  %v42 = vmul.f32 %v19, %v35
  %v43 = vmul.f32 %v20, %v35
  %v44 = vmul.f32 %v21, %v35
  %v45 = vmul.f32 %v22, %v35
  %v46 = vmul.f32 %v23, %v35
  %v47 = vmul.f32 %v24, %v35
  %v48 = vmul.f32 %v25, %v35
  %v49 = vmul.f32 %v26, %v35
  %v50 = vmul.f32 %v27, %v35
  %v51 = vmul.f32 %v28, %v35
  %v52 = vmul.f32 %v29, %v35
  %v53 = vld [vmem:[%s2] sm:$0x1]
  %v55 = vlaneseq
  %v56 = vshrl.u32 %v55, 7
  %v57 = vsub.s32 0, %v56
  %v58 = vrot.slane %v53, %v57
  %v60 = vadd.f32 %v37, %v58
  %v61 = vadd.f32 %v38, %v58
  %v62 = vadd.f32 %v39, %v58
  %v63 = vadd.f32 %v40, %v58
  %v64 = vadd.f32 %v41, %v58
  %v65 = vadd.f32 %v42, %v58
  %v66 = vadd.f32 %v43, %v58
  %v67 = vadd.f32 %v44, %v58
  %v68 = vadd.f32 %v45, %v58
  %v69 = vadd.f32 %v46, %v58
  %v70 = vadd.f32 %v47, %v58
  %v71 = vadd.f32 %v48, %v58
  %v72 = vadd.f32 %v49, %v58
  %v73 = vadd.f32 %v50, %v58
  %v74 = vadd.f32 %v51, %v58
  %v75 = vadd.f32 %v52, %v58
  %vm76 = vcmp.gt.f32.partialorder %v60, 0.0
  %vm77 = vcmp.gt.f32.partialorder %v61, 0.0
  %vm78 = vcmp.gt.f32.partialorder %v62, 0.0
  %vm79 = vcmp.gt.f32.partialorder %v63, 0.0
  %vm80 = vcmp.gt.f32.partialorder %v64, 0.0
  %vm81 = vcmp.gt.f32.partialorder %v65, 0.0
  %vm82 = vcmp.gt.f32.partialorder %v66, 0.0
  %vm83 = vcmp.gt.f32.partialorder %v67, 0.0
  %vm84 = vcmp.gt.f32.partialorder %v68, 0.0
  %vm85 = vcmp.gt.f32.partialorder %v69, 0.0
  %vm86 = vcmp.gt.f32.partialorder %v70, 0.0
  %vm87 = vcmp.gt.f32.partialorder %v71, 0.0
  %vm88 = vcmp.gt.f32.partialorder %v72, 0.0
  %vm89 = vcmp.gt.f32.partialorder %v73, 0.0
  %vm90 = vcmp.gt.f32.partialorder %v74, 0.0
  %vm91 = vcmp.gt.f32.partialorder %v75, 0.0
  %v92 = vmul.f32 %v60, 0.01
  %v93 = vmul.f32 %v61, 0.01
  %v94 = vmul.f32 %v62, 0.01
  %v95 = vmul.f32 %v63, 0.01
  %v96 = vmul.f32 %v64, 0.01
  %v97 = vmul.f32 %v65, 0.01
  %v98 = vmul.f32 %v66, 0.01
  %v99 = vmul.f32 %v67, 0.01
  %v100 = vmul.f32 %v68, 0.01
  %v101 = vmul.f32 %v69, 0.01
  %v102 = vmul.f32 %v70, 0.01
  %v103 = vmul.f32 %v71, 0.01
  %v104 = vmul.f32 %v72, 0.01
  %v105 = vmul.f32 %v73, 0.01
  %v106 = vmul.f32 %v74, 0.01
  %v107 = vmul.f32 %v75, 0.01
  %v108 = vsel %vm76, %v60, %v92
  %v109 = vsel %vm77, %v61, %v93
  %v110 = vsel %vm78, %v62, %v94
  %v111 = vsel %vm79, %v63, %v95
  %v112 = vsel %vm80, %v64, %v96
  %v113 = vsel %vm81, %v65, %v97
  %v114 = vsel %vm82, %v66, %v98
  %v115 = vsel %vm83, %v67, %v99
  %v116 = vsel %vm84, %v68, %v100
  %v117 = vsel %vm85, %v69, %v101
  %v118 = vsel %vm86, %v70, %v102
  %v119 = vsel %vm87, %v71, %v103
  %v120 = vsel %vm88, %v72, %v104
  %v121 = vsel %vm89, %v73, %v105
  %v122 = vsel %vm90, %v74, %v106
  %v123 = vsel %vm91, %v75, %v107
  %124 = vst [vmem:[%s3] sm:$0xff] %v108
  %125 = vst [vmem:[%s3 + $0x8] sm:$0xff] %v109
  %126 = vst [vmem:[%s3 + $0x10] sm:$0xff] %v110
  %127 = vst [vmem:[%s3 + $0x18] sm:$0xff] %v111
  %128 = vst [vmem:[%s3 + $0x20] sm:$0xff] %v112
  %129 = vst [vmem:[%s3 + $0x28] sm:$0xff] %v113
  %130 = vst [vmem:[%s3 + $0x30] sm:$0xff] %v114
  %131 = vst [vmem:[%s3 + $0x38] sm:$0xff] %v115
  %132 = vst [vmem:[%s3 + $0x40] sm:$0xff] %v116
  %133 = vst [vmem:[%s3 + $0x48] sm:$0xff] %v117
  %134 = vst [vmem:[%s3 + $0x50] sm:$0xff] %v118
  %135 = vst [vmem:[%s3 + $0x58] sm:$0xff] %v119
  %136 = vst [vmem:[%s3 + $0x60] sm:$0xff] %v120
  %137 = vst [vmem:[%s3 + $0x68] sm:$0xff] %v121
  %138 = vst [vmem:[%s3 + $0x70] sm:$0xff] %v122
  %139 = vst [vmem:[%s3 + $0x78] sm:$0xff] %v123
  // Predicated region
  $region14: #{_encoder_forward.7} parent=0 // pred_check
    _
  $region15: #{_encoder_forward.7} parent=0 // pred_check_branch
    %141 = sbr.rel (0) target = $region17
  $region16: #{_encoder_forward.7} parent=0 // pred_region
    _
  $region17: #{_encoder_forward.7} parent=0 // pred_fallthru
    _
  // Predicated region
  $region18: #{_encoder_forward.7} parent=0 // pred_check
    _
  $region19: #{_encoder_forward.7} parent=0 // pred_check_branch
    %143 = sbr.rel (0) target = $region21
  $region20: #{_encoder_forward.7} parent=0 // pred_region
    _
  $region21: #{_encoder_forward.7} parent=0 // pred_fallthru
    _

// kernel: _encoder_forward.6
$region0: #{_encoder_forward.6}
  #allocation0 [shape = 'u32[]', space=smem, size = 0x4, offset = 0x4, fixed_abs, tag = 'smem constant byte address 0x4 - core index']
  #allocation1 [shape = 'u32[144,128]{1,0:T(1,128)}', space=vmem, size = 0x12000, scoped, tag = 'internal scratch']
  #allocation2 [shape = 'f32[128,128]{1,0:T(8,128)}', space=vmem, size = 0x10000, scoped, tag = 'scratch operand']
  %s0 = inlined_call_operand.vmem [shape: bf16[128,128], index: 0, kind: input, shape index: {}]
  %s1 = inlined_call_operand.vmem [shape: bf16[128,128], index: 1, kind: input, shape index: {}]
  %s2 = inlined_call_operand.vmem [shape: f32[128,128], index: 2, kind: output, shape index: {0}]
  %s3 = inlined_call_operand.vmem [shape: f32[1,2,128], index: 3, kind: output, shape index: {1}]
  %4 = xla_tuple %s2, %s3
  %s5 = sld [smem:[#allocation0]]
  $region34: #{_encoder_forward.6} parent=0
    _
  %s7 = ssub.s32 1, %s5
  %s8 = scalar_select 0, %s7, %s5
  // Predicated region
  $region2: #{_encoder_forward.6} parent=0 // pred_check
    _
  $region3: #{_encoder_forward.6} parent=0 // pred_check_branch
    %10 = sbr.rel (0) target = $region5
  $region4: #{_encoder_forward.6} parent=0 // pred_region
    _
  $region5: #{_encoder_forward.6} parent=0 // pred_fallthru
    _
  // Predicated region
  $region6: #{_encoder_forward.6} parent=0 // pred_check
    _
  $region7: #{_encoder_forward.6} parent=0 // pred_check_branch
    %12 = sbr.rel (0) target = $region9
  $region8: #{_encoder_forward.6} parent=0 // pred_region
    _
  $region9: #{_encoder_forward.6} parent=0 // pred_fallthru
    _
  %p14 = scmp.eq.s32.totalorder 0, 0
  // Predicated region
  $region10: #{_encoder_forward.6} parent=0 // pred_check
    %p15 = pneg %p14
  $region11: #{_encoder_forward.6} parent=0 // pred_check_branch
    %17 = sbr.rel (%p15) target = $region13
  $region12: #{_encoder_forward.6} parent=0 // pred_region
    %18 = vst [vmem:[#allocation2] sm:$0xff] 0.0
    %19 = vst [vmem:[#allocation2 + $0x8] sm:$0xff] 0.0
    %20 = vst [vmem:[#allocation2 + $0x10] sm:$0xff] 0.0
    %21 = vst [vmem:[#allocation2 + $0x18] sm:$0xff] 0.0
    %22 = vst [vmem:[#allocation2 + $0x20] sm:$0xff] 0.0
    %23 = vst [vmem:[#allocation2 + $0x28] sm:$0xff] 0.0
    %24 = vst [vmem:[#allocation2 + $0x30] sm:$0xff] 0.0
    %25 = vst [vmem:[#allocation2 + $0x38] sm:$0xff] 0.0
    %26 = vst [vmem:[#allocation2 + $0x40] sm:$0xff] 0.0
    %27 = vst [vmem:[#allocation2 + $0x48] sm:$0xff] 0.0
    %28 = vst [vmem:[#allocation2 + $0x50] sm:$0xff] 0.0
    %29 = vst [vmem:[#allocation2 + $0x58] sm:$0xff] 0.0
    %30 = vst [vmem:[#allocation2 + $0x60] sm:$0xff] 0.0
    %31 = vst [vmem:[#allocation2 + $0x68] sm:$0xff] 0.0
    %32 = vst [vmem:[#allocation2 + $0x70] sm:$0xff] 0.0
    %33 = vst [vmem:[#allocation2 + $0x78] sm:$0xff] 0.0
  $region13: #{_encoder_forward.6} parent=0 // pred_fallthru
    _
  %v34 = vld [vmem:[#allocation2] sm:$0xff]
  %v35 = vld [vmem:[#allocation2 + $0x8] sm:$0xff]
  %v36 = vld [vmem:[#allocation2 + $0x10] sm:$0xff]
  %v37 = vld [vmem:[#allocation2 + $0x18] sm:$0xff]
  %v38 = vld [vmem:[#allocation2 + $0x20] sm:$0xff]
  %v39 = vld [vmem:[#allocation2 + $0x28] sm:$0xff]
  %v40 = vld [vmem:[#allocation2 + $0x30] sm:$0xff]
  %v41 = vld [vmem:[#allocation2 + $0x38] sm:$0xff]
  %v42 = vld [vmem:[#allocation2 + $0x40] sm:$0xff]
  %v43 = vld [vmem:[#allocation2 + $0x48] sm:$0xff]
  %v44 = vld [vmem:[#allocation2 + $0x50] sm:$0xff]
  %v45 = vld [vmem:[#allocation2 + $0x58] sm:$0xff]
  %v46 = vld [vmem:[#allocation2 + $0x60] sm:$0xff]
  %v47 = vld [vmem:[#allocation2 + $0x68] sm:$0xff]
  %v48 = vld [vmem:[#allocation2 + $0x70] sm:$0xff]
  %v49 = vld [vmem:[#allocation2 + $0x78] sm:$0xff]
  %v50 = vld [vmem:[%s0] sm:$0xf]
  %v51 = vld [vmem:[%s0 + $0x4] sm:$0xf]
  %v52 = vld [vmem:[%s0 + $0x8] sm:$0xf]
  %v53 = vld [vmem:[%s0 + $0xc] sm:$0xf]
  %v54 = vld [vmem:[%s0 + $0x10] sm:$0xf]
  %v55 = vld [vmem:[%s0 + $0x14] sm:$0xf]
  %v56 = vld [vmem:[%s0 + $0x18] sm:$0xf]
  %v57 = vld [vmem:[%s0 + $0x1c] sm:$0xf]
  %v58 = vld [vmem:[%s0 + $0x20] sm:$0xf]
  %v59 = vld [vmem:[%s0 + $0x24] sm:$0xf]
  %v60 = vld [vmem:[%s0 + $0x28] sm:$0xf]
  %v61 = vld [vmem:[%s0 + $0x2c] sm:$0xf]
  %v62 = vld [vmem:[%s0 + $0x30] sm:$0xf]
  %v63 = vld [vmem:[%s0 + $0x34] sm:$0xf]
  %v64 = vld [vmem:[%s0 + $0x38] sm:$0xf]
  %v65 = vld [vmem:[%s0 + $0x3c] sm:$0xf]
  %v66 = vld [vmem:[%s1] sm:$0xf]
  %v67 = vld [vmem:[%s1 + $0x4] sm:$0xf]
  %v68 = vld [vmem:[%s1 + $0x8] sm:$0xf]
  %v69 = vld [vmem:[%s1 + $0xc] sm:$0xf]
  %v70 = vld [vmem:[%s1 + $0x10] sm:$0xf]
  %v71 = vld [vmem:[%s1 + $0x14] sm:$0xf]
  %v72 = vld [vmem:[%s1 + $0x18] sm:$0xf]
  %v73 = vld [vmem:[%s1 + $0x1c] sm:$0xf]
  %v74 = vld [vmem:[%s1 + $0x20] sm:$0xf]
  %v75 = vld [vmem:[%s1 + $0x24] sm:$0xf]
  %v76 = vld [vmem:[%s1 + $0x28] sm:$0xf]
  %v77 = vld [vmem:[%s1 + $0x2c] sm:$0xf]
  %v78 = vld [vmem:[%s1 + $0x30] sm:$0xf]
  %v79 = vld [vmem:[%s1 + $0x34] sm:$0xf]
  %v80 = vld [vmem:[%s1 + $0x38] sm:$0xf]
  %v81 = vld [vmem:[%s1 + $0x3c] sm:$0xf]
  %v98 = vunpack.c.l.b16 %v50
  %v99 = vunpack.c.l.b16 %v51
  %v100 = vunpack.c.l.b16 %v52
  %v101 = vunpack.c.l.b16 %v53
  %v102 = vunpack.c.l.b16 %v54
  %v103 = vunpack.c.l.b16 %v55
  %v104 = vunpack.c.l.b16 %v56
  %v105 = vunpack.c.l.b16 %v57
  %v106 = vunpack.c.l.b16 %v58
  %v107 = vunpack.c.l.b16 %v59
  %v108 = vunpack.c.l.b16 %v60
  %v109 = vunpack.c.l.b16 %v61
  %v110 = vunpack.c.l.b16 %v62
  %v111 = vunpack.c.l.b16 %v63
  %v112 = vunpack.c.l.b16 %v64
  %v113 = vunpack.c.l.b16 %v65
  %v114 = vpack.c.b16 %v99, %v98
  %v115 = vpack.c.b16 %v101, %v100
  %v116 = vpack.c.b16 %v103, %v102
  %v117 = vpack.c.b16 %v105, %v104
  %v118 = vpack.c.b16 %v107, %v106
  %v119 = vpack.c.b16 %v109, %v108
  %v120 = vpack.c.b16 %v111, %v110
  %v121 = vpack.c.b16 %v113, %v112
  %v146 = vunpack.c.l.b16 %v66
  %v147 = vunpack.c.l.b16 %v67
  %v148 = vunpack.c.l.b16 %v68
  %v149 = vunpack.c.l.b16 %v69
  %v150 = vunpack.c.l.b16 %v70
  %v151 = vunpack.c.l.b16 %v71
  %v152 = vunpack.c.l.b16 %v72
  %v153 = vunpack.c.l.b16 %v73
  %v154 = vunpack.c.l.b16 %v74
  %v155 = vunpack.c.l.b16 %v75
  %v156 = vunpack.c.l.b16 %v76
  %v157 = vunpack.c.l.b16 %v77
  %v158 = vunpack.c.l.b16 %v78
  %v159 = vunpack.c.l.b16 %v79
  %v160 = vunpack.c.l.b16 %v80
  %v161 = vunpack.c.l.b16 %v81
  %v162 = vpack.c.b16 %v147, %v146
  %v163 = vpack.c.b16 %v149, %v148
  %v164 = vpack.c.b16 %v151, %v150
  %v165 = vpack.c.b16 %v153, %v152
  %v166 = vpack.c.b16 %v155, %v154
  %v167 = vpack.c.b16 %v157, %v156
  %v168 = vpack.c.b16 %v159, %v158
  %v169 = vpack.c.b16 %v161, %v160
  %178 = vmatprep.subr.bf16.mxu0 0
  %179 = vmatpush1.bf16.msra.mxu0 %v169
  %180 = vmatprep.subr.bf16.mxu0 0
  %181 = vmatpush1.bf16.msra.mxu0 %v168
  %182 = vmatprep.subr.bf16.mxu0 0
  %183 = vmatpush1.bf16.msra.mxu0 %v167
  %184 = vmatprep.subr.bf16.mxu0 0
  %185 = vmatpush1.bf16.msra.mxu0 %v166
  %186 = vmatprep.subr.bf16.mxu0 0
  %187 = vmatpush1.bf16.msra.mxu0 %v165
  %188 = vmatprep.subr.bf16.mxu0 0
  %189 = vmatpush1.bf16.msra.mxu0 %v164
  %190 = vmatprep.subr.bf16.mxu0 0
  %191 = vmatpush1.bf16.msra.mxu0 %v163
  %192 = vmatprep.subr.bf16.mxu0 0
  %193 = vmatpush1.bf16.msra.mxu0 %v162
  %194 = vmatprep.subr.bf16.mxu0 0
  %195 = vmatpush2.bf16.msra.mxu0 0
  %196 = vmatprep.subr.bf16.mxu0 0
  %197 = vmatpush2.bf16.msra.mxu0 0
  %198 = vmatprep.subr.bf16.mxu0 0
  %199 = vmatpush2.bf16.msra.mxu0 0
  %200 = vmatprep.subr.bf16.mxu0 0
  %201 = vmatpush2.bf16.msra.mxu0 0
  %202 = vmatprep.subr.bf16.mxu0 0
  %203 = vmatpush2.bf16.msra.mxu0 0
  %204 = vmatprep.subr.bf16.mxu0 0
  %205 = vmatpush2.bf16.msra.mxu0 0
  %206 = vmatprep.subr.bf16.mxu0 0
  %207 = vmatpush2.bf16.msra.mxu0 0
  %208 = vmatprep.subr.bf16.mxu0 0
  %209 = vmatpush2.bf16.msra.mxu0 0
  %210 = vmatprep.mubr.bf16.mxu0 0
  %211 = vmatmul.mubr.bf16.gmra.mxu0 %v114
  %v212 = vpop.f32.mrf.mxu0
  %v213 = vadd.f32 0.0, %v212
  %v214 = vpop.f32.mrf.mxu0
  %v215 = vpop.f32.mrf.mxu0
  %v216 = vadd.f32 0.0, %v215
  %v217 = vpop.f32.mrf.mxu0
  %218 = vmatprep.mubr.bf16.mxu0 0
  %219 = vmatmul.mubr.bf16.gmra.mxu0 %v115
  %v220 = vpop.f32.mrf.mxu0
  %v221 = vadd.f32 0.0, %v220
  %v222 = vpop.f32.mrf.mxu0
  %v223 = vpop.f32.mrf.mxu0
  %v224 = vadd.f32 0.0, %v223
  %v225 = vpop.f32.mrf.mxu0
  %226 = vmatprep.mubr.bf16.mxu0 0
  %227 = vmatmul.mubr.bf16.gmra.mxu0 %v116
  %v228 = vpop.f32.mrf.mxu0
  %v229 = vadd.f32 0.0, %v228
  %v230 = vpop.f32.mrf.mxu0
  %v231 = vpop.f32.mrf.mxu0
  %v232 = vadd.f32 0.0, %v231
  %v233 = vpop.f32.mrf.mxu0
  %234 = vmatprep.mubr.bf16.mxu0 0
  %235 = vmatmul.mubr.bf16.gmra.mxu0 %v117
  %v236 = vpop.f32.mrf.mxu0
  %v237 = vadd.f32 0.0, %v236
  %v238 = vpop.f32.mrf.mxu0
  %v239 = vpop.f32.mrf.mxu0
  %v240 = vadd.f32 0.0, %v239
  %v241 = vpop.f32.mrf.mxu0
  %242 = vmatprep.mubr.bf16.mxu0 0
  %243 = vmatmul.mubr.bf16.gmra.mxu0 %v118
  %v244 = vpop.f32.mrf.mxu0
  %v245 = vadd.f32 0.0, %v244
  %v246 = vpop.f32.mrf.mxu0
  %v247 = vpop.f32.mrf.mxu0
  %v248 = vadd.f32 0.0, %v247
  %v249 = vpop.f32.mrf.mxu0
  %250 = vmatprep.mubr.bf16.mxu0 0
  %251 = vmatmul.mubr.bf16.gmra.mxu0 %v119
  %v252 = vpop.f32.mrf.mxu0
  %v253 = vadd.f32 0.0, %v252
  %v254 = vpop.f32.mrf.mxu0
  %v255 = vpop.f32.mrf.mxu0
  %v256 = vadd.f32 0.0, %v255
  %v257 = vpop.f32.mrf.mxu0
  %258 = vmatprep.mubr.bf16.mxu0 0
  %259 = vmatmul.mubr.bf16.gmra.mxu0 %v120
  %v260 = vpop.f32.mrf.mxu0
  %v261 = vadd.f32 0.0, %v260
  %v262 = vpop.f32.mrf.mxu0
  %v263 = vpop.f32.mrf.mxu0
  %v264 = vadd.f32 0.0, %v263
  %v265 = vpop.f32.mrf.mxu0
  %266 = vmatprep.mubr.bf16.mxu0 0
  %267 = vmatmul.mubr.bf16.gmra.mxu0 %v121
  %v268 = vpop.f32.mrf.mxu0
  %v269 = vadd.f32 0.0, %v268
  %v270 = vpop.f32.mrf.mxu0
  %v271 = vpop.f32.mrf.mxu0
  %v272 = vadd.f32 0.0, %v271
  %v273 = vpop.f32.mrf.mxu0
  %274 = vdwg.mxu0
  %v275 = vadd.f32 %v34, %v213
  %v276 = vadd.f32 %v35, %v216
  %v277 = vadd.f32 %v36, %v221
  %v278 = vadd.f32 %v37, %v224
  %v279 = vadd.f32 %v38, %v229
  %v280 = vadd.f32 %v39, %v232
  %v281 = vadd.f32 %v40, %v237
  %v282 = vadd.f32 %v41, %v240
  %v283 = vadd.f32 %v42, %v245
  %v284 = vadd.f32 %v43, %v248
  %v285 = vadd.f32 %v44, %v253
  %v286 = vadd.f32 %v45, %v256
  %v287 = vadd.f32 %v46, %v261
  %v288 = vadd.f32 %v47, %v264
  %v289 = vadd.f32 %v48, %v269
  %v290 = vadd.f32 %v49, %v272
  %291 = vst [vmem:[#allocation2] sm:$0xff] %v275
  %292 = vst [vmem:[#allocation2 + $0x8] sm:$0xff] %v276
  %293 = vst [vmem:[#allocation2 + $0x10] sm:$0xff] %v277
  %294 = vst [vmem:[#allocation2 + $0x18] sm:$0xff] %v278
  %295 = vst [vmem:[#allocation2 + $0x20] sm:$0xff] %v279
  %296 = vst [vmem:[#allocation2 + $0x28] sm:$0xff] %v280
  %297 = vst [vmem:[#allocation2 + $0x30] sm:$0xff] %v281
  %298 = vst [vmem:[#allocation2 + $0x38] sm:$0xff] %v282
  %299 = vst [vmem:[#allocation2 + $0x40] sm:$0xff] %v283
  %300 = vst [vmem:[#allocation2 + $0x48] sm:$0xff] %v284
  %301 = vst [vmem:[#allocation2 + $0x50] sm:$0xff] %v285
  %302 = vst [vmem:[#allocation2 + $0x58] sm:$0xff] %v286
  %303 = vst [vmem:[#allocation2 + $0x60] sm:$0xff] %v287
  %304 = vst [vmem:[#allocation2 + $0x68] sm:$0xff] %v288
  %305 = vst [vmem:[#allocation2 + $0x70] sm:$0xff] %v289
  %306 = vst [vmem:[#allocation2 + $0x78] sm:$0xff] %v290
  // Predicated region
  $region14: #{_encoder_forward.6} parent=0 // pred_check
    %p307 = pneg %p14
  $region15: #{_encoder_forward.6} parent=0 // pred_check_branch
    %309 = sbr.rel (%p307) target = $region17
  $region16: #{_encoder_forward.6} parent=0 // pred_region
    %v310 = vld [vmem:[#allocation2] sm:$0xff]
    %v311 = vld [vmem:[#allocation2 + $0x8] sm:$0xff]
    %v312 = vld [vmem:[#allocation2 + $0x10] sm:$0xff]
    %v313 = vld [vmem:[#allocation2 + $0x18] sm:$0xff]
    %v314 = vld [vmem:[#allocation2 + $0x20] sm:$0xff]
    %v315 = vld [vmem:[#allocation2 + $0x28] sm:$0xff]
    %v316 = vld [vmem:[#allocation2 + $0x30] sm:$0xff]
    %v317 = vld [vmem:[#allocation2 + $0x38] sm:$0xff]
    %v318 = vld [vmem:[#allocation2 + $0x40] sm:$0xff]
    %v319 = vld [vmem:[#allocation2 + $0x48] sm:$0xff]
    %v320 = vld [vmem:[#allocation2 + $0x50] sm:$0xff]
    %v321 = vld [vmem:[#allocation2 + $0x58] sm:$0xff]
    %v322 = vld [vmem:[#allocation2 + $0x60] sm:$0xff]
    %v323 = vld [vmem:[#allocation2 + $0x68] sm:$0xff]
    %v324 = vld [vmem:[#allocation2 + $0x70] sm:$0xff]
    %v325 = vld [vmem:[#allocation2 + $0x78] sm:$0xff]
    %326 = vst [vmem:[%s2] sm:$0xff] %v310
    %327 = vst [vmem:[%s2 + $0x8] sm:$0xff] %v311
    %328 = vst [vmem:[%s2 + $0x10] sm:$0xff] %v312
    %329 = vst [vmem:[%s2 + $0x18] sm:$0xff] %v313
    %330 = vst [vmem:[%s2 + $0x20] sm:$0xff] %v314
    %331 = vst [vmem:[%s2 + $0x28] sm:$0xff] %v315
    %332 = vst [vmem:[%s2 + $0x30] sm:$0xff] %v316
    %333 = vst [vmem:[%s2 + $0x38] sm:$0xff] %v317
    %334 = vst [vmem:[%s2 + $0x40] sm:$0xff] %v318
    %335 = vst [vmem:[%s2 + $0x48] sm:$0xff] %v319
    %336 = vst [vmem:[%s2 + $0x50] sm:$0xff] %v320
    %337 = vst [vmem:[%s2 + $0x58] sm:$0xff] %v321
    %338 = vst [vmem:[%s2 + $0x60] sm:$0xff] %v322
    %339 = vst [vmem:[%s2 + $0x68] sm:$0xff] %v323
    %340 = vst [vmem:[%s2 + $0x70] sm:$0xff] %v324
    %341 = vst [vmem:[%s2 + $0x78] sm:$0xff] %v325
    %v342 = vadd.f32 %v310, %v311
    %v343 = vadd.f32 %v342, %v312
    %v344 = vadd.f32 %v343, %v313
    %v345 = vadd.f32 %v344, %v314
    %v346 = vadd.f32 %v345, %v315
    %v347 = vadd.f32 %v346, %v316
    %v348 = vadd.f32 %v347, %v317
    %v349 = vadd.f32 %v348, %v318
    %v350 = vadd.f32 %v349, %v319
    %v351 = vadd.f32 %v350, %v320
    %v352 = vadd.f32 %v351, %v321
    %v353 = vadd.f32 %v352, %v322
    %v354 = vadd.f32 %v353, %v323
    %v355 = vadd.f32 %v354, %v324
    %v356 = vadd.f32 %v355, %v325
    %v357 = vrot.slane %v356, 4
    %v358 = vadd.f32 %v356, %v357
    %v359 = vrot.slane %v358, 2
    %v360 = vadd.f32 %v358, %v359
    %v361 = vrot.slane %v360, 1
    %v362 = vadd.f32 %v360, %v361
    %363 = vst [vmem:[%s3] sm:$0x1] %v362
    %v364 = vmul.f32 %v310, %v310
    %v365 = vmul.f32 %v311, %v311
    %v366 = vmul.f32 %v312, %v312
    %v367 = vmul.f32 %v313, %v313
    %v368 = vmul.f32 %v314, %v314
    %v369 = vmul.f32 %v315, %v315
    %v370 = vmul.f32 %v316, %v316
    %v371 = vmul.f32 %v317, %v317
    %v372 = vmul.f32 %v318, %v318
    %v373 = vmul.f32 %v319, %v319
    %v374 = vmul.f32 %v320, %v320
    %v375 = vmul.f32 %v321, %v321
    %v376 = vmul.f32 %v322, %v322
    %v377 = vmul.f32 %v323, %v323
    %v378 = vmul.f32 %v324, %v324
    %v379 = vmul.f32 %v325, %v325
    %v380 = vadd.f32 %v364, %v365
    %v381 = vadd.f32 %v380, %v366
    %v382 = vadd.f32 %v381, %v367
    %v383 = vadd.f32 %v382, %v368
    %v384 = vadd.f32 %v383, %v369
    %v385 = vadd.f32 %v384, %v370
    %v386 = vadd.f32 %v385, %v371
    %v387 = vadd.f32 %v386, %v372
    %v388 = vadd.f32 %v387, %v373
    %v389 = vadd.f32 %v388, %v374
    %v390 = vadd.f32 %v389, %v375
    %v391 = vadd.f32 %v390, %v376
    %v392 = vadd.f32 %v391, %v377
    %v393 = vadd.f32 %v392, %v378
    %v394 = vadd.f32 %v393, %v379
    %v395 = vrot.slane %v394, 4
    %v396 = vadd.f32 %v394, %v395
    %v397 = vrot.slane %v396, 2
    %v398 = vadd.f32 %v396, %v397
    %v399 = vrot.slane %v398, 1
    %v400 = vadd.f32 %v398, %v399
    %401 = vst [vmem:[%s3 + $0x1] sm:$0x1] %v400
  $region17: #{_encoder_forward.6} parent=0 // pred_fallthru
    _
  // Predicated region
  $region18: #{_encoder_forward.6} parent=0 // pred_check
    _
  $region19: #{_encoder_forward.6} parent=0 // pred_check_branch
    %403 = sbr.rel (0) target = $region21
  $region20: #{_encoder_forward.6} parent=0 // pred_region
    _
  $region21: #{_encoder_forward.6} parent=0 // pred_fallthru
    _
  // Predicated region
  $region22: #{_encoder_forward.6} parent=0 // pred_check
    _
  $region23: #{_encoder_forward.6} parent=0 // pred_check_branch
    %405 = sbr.rel (0) target = $region25
  $region24: #{_encoder_forward.6} parent=0 // pred_region
    _
  $region25: #{_encoder_forward.6} parent=0 // pred_fallthru
    _
  // Predicated region
  $region26: #{_encoder_forward.6} parent=0 // pred_check
    _
  $region27: #{_encoder_forward.6} parent=0 // pred_check_branch
    %407 = sbr.rel (0) target = $region29
  $region28: #{_encoder_forward.6} parent=0 // pred_region
    _
  $region29: #{_encoder_forward.6} parent=0 // pred_fallthru
    _
  // Predicated region
  $region30: #{_encoder_forward.6} parent=0 // pred_check
    _
  $region31: #{_encoder_forward.6} parent=0 // pred_check_branch
    %409 = sbr.rel (0) target = $region33
  $region32: #{_encoder_forward.6} parent=0 // pred_region
    _
  $region33: #{_encoder_forward.6} parent=0 // pred_fallthru
    _

// kernel: _encoder_forward.9
$region0: #{_encoder_forward.9}
  #allocation0 [shape = 'u32[]', space=smem, size = 0x4, offset = 0x4, fixed_abs, tag = 'smem constant byte address 0x4 - core index']
  #allocation1 [shape = 'u32[144,128]{1,0:T(1,128)}', space=vmem, size = 0x12000, scoped, tag = 'internal scratch']
  %s0 = inlined_call_operand.vmem [shape: f32[32,128], index: 0, kind: input, shape index: {}, may-alias: {0,3}]
  %s1 = inlined_call_operand.vmem [shape: f32[1,128], index: 1, kind: input, shape index: {}]
  %s2 = inlined_call_operand.vmem [shape: f32[1,128], index: 2, kind: input, shape index: {}]
  %s3 = inlined_call_operand.vmem [shape: f32[32,128], index: 3, kind: output, shape index: {}, may-alias: {0,3}]
  %s4 = sld [smem:[#allocation0]]
  $region22: #{_encoder_forward.9} parent=0
    _
  %s6 = ssub.s32 1, %s4
  %s7 = scalar_select 0, %s6, %s4
  // Predicated region
  $region2: #{_encoder_forward.9} parent=0 // pred_check
    _
  $region3: #{_encoder_forward.9} parent=0 // pred_check_branch
    %9 = sbr.rel (0) target = $region5
  $region4: #{_encoder_forward.9} parent=0 // pred_region
    _
  $region5: #{_encoder_forward.9} parent=0 // pred_fallthru
    _
  // Predicated region
  $region6: #{_encoder_forward.9} parent=0 // pred_check
    _
  $region7: #{_encoder_forward.9} parent=0 // pred_check_branch
    %11 = sbr.rel (0) target = $region9
  $region8: #{_encoder_forward.9} parent=0 // pred_region
    _
  $region9: #{_encoder_forward.9} parent=0 // pred_fallthru
    _
  // Predicated region
  $region10: #{_encoder_forward.9} parent=0 // pred_check
    _
  $region11: #{_encoder_forward.9} parent=0 // pred_check_branch
    %13 = sbr.rel (0) target = $region13
  $region12: #{_encoder_forward.9} parent=0 // pred_region
    _
  $region13: #{_encoder_forward.9} parent=0 // pred_fallthru
    _
  %v14 = vld [vmem:[%s0] sm:$0xff]
  %v15 = vld [vmem:[%s0 + $0x8] sm:$0xff]
  %v16 = vld [vmem:[%s0 + $0x10] sm:$0xff]
  %v17 = vld [vmem:[%s0 + $0x18] sm:$0xff]
  %v18 = vld [vmem:[%s1] sm:$0x1]
  %v20 = vlaneseq
  %v21 = vshrl.u32 %v20, 7
  %v22 = vsub.s32 0, %v21
  %v23 = vrot.slane %v18, %v22
  %v25 = vmul.f32 %v14, %v23
  %v26 = vmul.f32 %v15, %v23
  %v27 = vmul.f32 %v16, %v23
  %v28 = vmul.f32 %v17, %v23
  %v29 = vld [vmem:[%s2] sm:$0x1]
  %v31 = vlaneseq
  %v32 = vshrl.u32 %v31, 7
  %v33 = vsub.s32 0, %v32
  %v34 = vrot.slane %v29, %v33
  %v36 = vadd.f32 %v25, %v34
  %v37 = vadd.f32 %v26, %v34
  %v38 = vadd.f32 %v27, %v34
  %v39 = vadd.f32 %v28, %v34
  %vm40 = vcmp.gt.f32.partialorder %v36, 0.0
  %vm41 = vcmp.gt.f32.partialorder %v37, 0.0
  %vm42 = vcmp.gt.f32.partialorder %v38, 0.0
  %vm43 = vcmp.gt.f32.partialorder %v39, 0.0
  %v44 = vmul.f32 %v36, 0.01
  %v45 = vmul.f32 %v37, 0.01
  %v46 = vmul.f32 %v38, 0.01
  %v47 = vmul.f32 %v39, 0.01
  %v48 = vsel %vm40, %v36, %v44
  %v49 = vsel %vm41, %v37, %v45
  %v50 = vsel %vm42, %v38, %v46
  %v51 = vsel %vm43, %v39, %v47
  %52 = vst [vmem:[%s3] sm:$0xff] %v48
  %53 = vst [vmem:[%s3 + $0x8] sm:$0xff] %v49
  %54 = vst [vmem:[%s3 + $0x10] sm:$0xff] %v50
  %55 = vst [vmem:[%s3 + $0x18] sm:$0xff] %v51
  // Predicated region
  $region14: #{_encoder_forward.9} parent=0 // pred_check
    _
  $region15: #{_encoder_forward.9} parent=0 // pred_check_branch
    %57 = sbr.rel (0) target = $region17
  $region16: #{_encoder_forward.9} parent=0 // pred_region
    _
  $region17: #{_encoder_forward.9} parent=0 // pred_fallthru
    _
  // Predicated region
  $region18: #{_encoder_forward.9} parent=0 // pred_check
    _
  $region19: #{_encoder_forward.9} parent=0 // pred_check_branch
    %59 = sbr.rel (0) target = $region21
  $region20: #{_encoder_forward.9} parent=0 // pred_region
    _
  $region21: #{_encoder_forward.9} parent=0 // pred_fallthru
    _

// kernel: _encoder_forward.8
$region0: #{_encoder_forward.8}
  #allocation0 [shape = 'u32[]', space=smem, size = 0x4, offset = 0x4, fixed_abs, tag = 'smem constant byte address 0x4 - core index']
  #allocation1 [shape = 'u32[144,128]{1,0:T(1,128)}', space=vmem, size = 0x12000, scoped, tag = 'internal scratch']
  #allocation2 [shape = 'f32[32,128]{1,0:T(8,128)}', space=vmem, size = 0x4000, scoped, tag = 'scratch operand']
  %s0 = inlined_call_operand.vmem [shape: bf16[32,128], index: 0, kind: input, shape index: {}]
  %s1 = inlined_call_operand.vmem [shape: bf16[128,128], index: 1, kind: input, shape index: {}]
  %s2 = inlined_call_operand.vmem [shape: f32[32,128], index: 2, kind: output, shape index: {0}]
  %s3 = inlined_call_operand.vmem [shape: f32[1,2,128], index: 3, kind: output, shape index: {1}]
  %4 = xla_tuple %s2, %s3
  %s5 = sld [smem:[#allocation0]]
  $region34: #{_encoder_forward.8} parent=0
    _
  %s7 = ssub.s32 1, %s5
  %s8 = scalar_select 0, %s7, %s5
  // Predicated region
  $region2: #{_encoder_forward.8} parent=0 // pred_check
    _
  $region3: #{_encoder_forward.8} parent=0 // pred_check_branch
    %10 = sbr.rel (0) target = $region5
  $region4: #{_encoder_forward.8} parent=0 // pred_region
    _
  $region5: #{_encoder_forward.8} parent=0 // pred_fallthru
    _
  // Predicated region
  $region6: #{_encoder_forward.8} parent=0 // pred_check
    _
  $region7: #{_encoder_forward.8} parent=0 // pred_check_branch
    %12 = sbr.rel (0) target = $region9
  $region8: #{_encoder_forward.8} parent=0 // pred_region
    _
  $region9: #{_encoder_forward.8} parent=0 // pred_fallthru
    _
  %p14 = scmp.eq.s32.totalorder 0, 0
  // Predicated region
  $region10: #{_encoder_forward.8} parent=0 // pred_check
    %p15 = pneg %p14
  $region11: #{_encoder_forward.8} parent=0 // pred_check_branch
    %17 = sbr.rel (%p15) target = $region13
  $region12: #{_encoder_forward.8} parent=0 // pred_region
    %18 = vst [vmem:[#allocation2] sm:$0xff] 0.0
    %19 = vst [vmem:[#allocation2 + $0x8] sm:$0xff] 0.0
    %20 = vst [vmem:[#allocation2 + $0x10] sm:$0xff] 0.0
    %21 = vst [vmem:[#allocation2 + $0x18] sm:$0xff] 0.0
  $region13: #{_encoder_forward.8} parent=0 // pred_fallthru
    _
  %v22 = vld [vmem:[#allocation2] sm:$0xff]
  %v23 = vld [vmem:[#allocation2 + $0x8] sm:$0xff]
  %v24 = vld [vmem:[#allocation2 + $0x10] sm:$0xff]
  %v25 = vld [vmem:[#allocation2 + $0x18] sm:$0xff]
  %v26 = vld [vmem:[%s0] sm:$0xf]
  %v27 = vld [vmem:[%s0 + $0x4] sm:$0xf]
  %v28 = vld [vmem:[%s0 + $0x8] sm:$0xf]
  %v29 = vld [vmem:[%s0 + $0xc] sm:$0xf]
  %v30 = vld [vmem:[%s1] sm:$0xf]
  %v31 = vld [vmem:[%s1 + $0x4] sm:$0xf]
  %v32 = vld [vmem:[%s1 + $0x8] sm:$0xf]
  %v33 = vld [vmem:[%s1 + $0xc] sm:$0xf]
  %v34 = vld [vmem:[%s1 + $0x10] sm:$0xf]
  %v35 = vld [vmem:[%s1 + $0x14] sm:$0xf]
  %v36 = vld [vmem:[%s1 + $0x18] sm:$0xf]
  %v37 = vld [vmem:[%s1 + $0x1c] sm:$0xf]
  %v38 = vld [vmem:[%s1 + $0x20] sm:$0xf]
  %v39 = vld [vmem:[%s1 + $0x24] sm:$0xf]
  %v40 = vld [vmem:[%s1 + $0x28] sm:$0xf]
  %v41 = vld [vmem:[%s1 + $0x2c] sm:$0xf]
  %v42 = vld [vmem:[%s1 + $0x30] sm:$0xf]
  %v43 = vld [vmem:[%s1 + $0x34] sm:$0xf]
  %v44 = vld [vmem:[%s1 + $0x38] sm:$0xf]
  %v45 = vld [vmem:[%s1 + $0x3c] sm:$0xf]
  %v50 = vunpack.c.l.b16 %v26
  %v51 = vunpack.c.l.b16 %v27
  %v52 = vunpack.c.l.b16 %v28
  %v53 = vunpack.c.l.b16 %v29
  %v54 = vpack.c.b16 %v51, %v50
  %v55 = vpack.c.b16 %v53, %v52
  %v74 = vunpack.c.l.b16 %v30
  %v75 = vunpack.c.l.b16 %v31
  %v76 = vunpack.c.l.b16 %v32
  %v77 = vunpack.c.l.b16 %v33
  %v78 = vunpack.c.l.b16 %v34
  %v79 = vunpack.c.l.b16 %v35
  %v80 = vunpack.c.l.b16 %v36
  %v81 = vunpack.c.l.b16 %v37
  %v82 = vunpack.c.l.b16 %v38
  %v83 = vunpack.c.l.b16 %v39
  %v84 = vunpack.c.l.b16 %v40
  %v85 = vunpack.c.l.b16 %v41
  %v86 = vunpack.c.l.b16 %v42
  %v87 = vunpack.c.l.b16 %v43
  %v88 = vunpack.c.l.b16 %v44
  %v89 = vunpack.c.l.b16 %v45
  %v90 = vpack.c.b16 %v75, %v74
  %v91 = vpack.c.b16 %v77, %v76
  %v92 = vpack.c.b16 %v79, %v78
  %v93 = vpack.c.b16 %v81, %v80
  %v94 = vpack.c.b16 %v83, %v82
  %v95 = vpack.c.b16 %v85, %v84
  %v96 = vpack.c.b16 %v87, %v86
  %v97 = vpack.c.b16 %v89, %v88
  %106 = vmatprep.subr.bf16.mxu0 0
  %107 = vmatpush1.bf16.msra.mxu0 %v97
  %108 = vmatprep.subr.bf16.mxu0 0
  %109 = vmatpush1.bf16.msra.mxu0 %v96
  %110 = vmatprep.subr.bf16.mxu0 0
  %111 = vmatpush1.bf16.msra.mxu0 %v95
  %112 = vmatprep.subr.bf16.mxu0 0
  %113 = vmatpush1.bf16.msra.mxu0 %v94
  %114 = vmatprep.subr.bf16.mxu0 0
  %115 = vmatpush1.bf16.msra.mxu0 %v93
  %116 = vmatprep.subr.bf16.mxu0 0
  %117 = vmatpush1.bf16.msra.mxu0 %v92
  %118 = vmatprep.subr.bf16.mxu0 0
  %119 = vmatpush1.bf16.msra.mxu0 %v91
  %120 = vmatprep.subr.bf16.mxu0 0
  %121 = vmatpush1.bf16.msra.mxu0 %v90
  %122 = vmatprep.subr.bf16.mxu0 0
  %123 = vmatpush2.bf16.msra.mxu0 0
  %124 = vmatprep.subr.bf16.mxu0 0
  %125 = vmatpush2.bf16.msra.mxu0 0
  %126 = vmatprep.subr.bf16.mxu0 0
  %127 = vmatpush2.bf16.msra.mxu0 0
  %128 = vmatprep.subr.bf16.mxu0 0
  %129 = vmatpush2.bf16.msra.mxu0 0
  %130 = vmatprep.subr.bf16.mxu0 0
  %131 = vmatpush2.bf16.msra.mxu0 0
  %132 = vmatprep.subr.bf16.mxu0 0
  %133 = vmatpush2.bf16.msra.mxu0 0
  %134 = vmatprep.subr.bf16.mxu0 0
  %135 = vmatpush2.bf16.msra.mxu0 0
  %136 = vmatprep.subr.bf16.mxu0 0
  %137 = vmatpush2.bf16.msra.mxu0 0
  %138 = vmatprep.mubr.bf16.mxu0 0
  %139 = vmatmul.mubr.bf16.gmra.mxu0 %v54
  %v140 = vpop.f32.mrf.mxu0
  %v141 = vadd.f32 0.0, %v140
  %v142 = vpop.f32.mrf.mxu0
  %v143 = vpop.f32.mrf.mxu0
  %v144 = vadd.f32 0.0, %v143
  %v145 = vpop.f32.mrf.mxu0
  %146 = vmatprep.mubr.bf16.mxu0 0
  %147 = vmatmul.mubr.bf16.gmra.mxu0 %v55
  %v148 = vpop.f32.mrf.mxu0
  %v149 = vadd.f32 0.0, %v148
  %v150 = vpop.f32.mrf.mxu0
  %v151 = vpop.f32.mrf.mxu0
  %v152 = vadd.f32 0.0, %v151
  %v153 = vpop.f32.mrf.mxu0
  %154 = vdwg.mxu0
  %v155 = vadd.f32 %v22, %v141
  %v156 = vadd.f32 %v23, %v144
  %v157 = vadd.f32 %v24, %v149
  %v158 = vadd.f32 %v25, %v152
  %159 = vst [vmem:[#allocation2] sm:$0xff] %v155
  %160 = vst [vmem:[#allocation2 + $0x8] sm:$0xff] %v156
  %161 = vst [vmem:[#allocation2 + $0x10] sm:$0xff] %v157
  %162 = vst [vmem:[#allocation2 + $0x18] sm:$0xff] %v158
  // Predicated region
  $region14: #{_encoder_forward.8} parent=0 // pred_check
    %p163 = pneg %p14
  $region15: #{_encoder_forward.8} parent=0 // pred_check_branch
    %165 = sbr.rel (%p163) target = $region17
  $region16: #{_encoder_forward.8} parent=0 // pred_region
    %v166 = vld [vmem:[#allocation2] sm:$0xff]
    %v167 = vld [vmem:[#allocation2 + $0x8] sm:$0xff]
    %v168 = vld [vmem:[#allocation2 + $0x10] sm:$0xff]
    %v169 = vld [vmem:[#allocation2 + $0x18] sm:$0xff]
    %170 = vst [vmem:[%s2] sm:$0xff] %v166
    %171 = vst [vmem:[%s2 + $0x8] sm:$0xff] %v167
    %172 = vst [vmem:[%s2 + $0x10] sm:$0xff] %v168
    %173 = vst [vmem:[%s2 + $0x18] sm:$0xff] %v169
    %v174 = vadd.f32 %v166, %v167
    %v175 = vadd.f32 %v174, %v168
    %v176 = vadd.f32 %v175, %v169
    %v177 = vrot.slane %v176, 4
    %v178 = vadd.f32 %v176, %v177
    %v179 = vrot.slane %v178, 2
    %v180 = vadd.f32 %v178, %v179
    %v181 = vrot.slane %v180, 1
    %v182 = vadd.f32 %v180, %v181
    %183 = vst [vmem:[%s3] sm:$0x1] %v182
    %v184 = vmul.f32 %v166, %v166
    %v185 = vmul.f32 %v167, %v167
    %v186 = vmul.f32 %v168, %v168
    %v187 = vmul.f32 %v169, %v169
    %v188 = vadd.f32 %v184, %v185
    %v189 = vadd.f32 %v188, %v186
    %v190 = vadd.f32 %v189, %v187
    %v191 = vrot.slane %v190, 4
    %v192 = vadd.f32 %v190, %v191
    %v193 = vrot.slane %v192, 2
    %v194 = vadd.f32 %v192, %v193
    %v195 = vrot.slane %v194, 1
    %v196 = vadd.f32 %v194, %v195
    %197 = vst [vmem:[%s3 + $0x1] sm:$0x1] %v196
  $region17: #{_encoder_forward.8} parent=0 // pred_fallthru
    _
  // Predicated region
  $region18: #{_encoder_forward.8} parent=0 // pred_check
    _
  $region19: #{_encoder_forward.8} parent=0 // pred_check_branch
    %199 = sbr.rel (0) target = $region21
  $region20: #{_encoder_forward.8} parent=0 // pred_region
    _
  $region21: #{_encoder_forward.8} parent=0 // pred_fallthru
    _
  // Predicated region
  $region22: #{_encoder_forward.8} parent=0 // pred_check
    _
  $region23: #{_encoder_forward.8} parent=0 // pred_check_branch
    %201 = sbr.rel (0) target = $region25
  $region24: #{_encoder_forward.8} parent=0 // pred_region
    _
  $region25: #{_encoder_forward.8} parent=0 // pred_fallthru
    _
  // Predicated region
  $region26: #{_encoder_forward.8} parent=0 // pred_check
    _
  $region27: #{_encoder_forward.8} parent=0 // pred_check_branch
    %203 = sbr.rel (0) target = $region29
  $region28: #{_encoder_forward.8} parent=0 // pred_region
    _
  $region29: #{_encoder_forward.8} parent=0 // pred_fallthru
    _
  // Predicated region
  $region30: #{_encoder_forward.8} parent=0 // pred_check
    _
  $region31: #{_encoder_forward.8} parent=0 // pred_check_branch
    %205 = sbr.rel (0) target = $region33
  $region32: #{_encoder_forward.8} parent=0 // pred_region
    _
  $region33: #{_encoder_forward.8} parent=0 // pred_fallthru
    _

// kernel: _encoder_forward.11
$region0: #{_encoder_forward.11}
  #allocation0 [shape = 'u32[]', space=smem, size = 0x4, offset = 0x4, fixed_abs, tag = 'smem constant byte address 0x4 - core index']
  #allocation1 [shape = 'u32[144,128]{1,0:T(1,128)}', space=vmem, size = 0x12000, scoped, tag = 'internal scratch']
  %s0 = inlined_call_operand.vmem [shape: f32[8,128], index: 0, kind: input, shape index: {}, may-alias: {0,3}]
  %s1 = inlined_call_operand.vmem [shape: f32[1,128], index: 1, kind: input, shape index: {}]
  %s2 = inlined_call_operand.vmem [shape: f32[1,128], index: 2, kind: input, shape index: {}]
  %s3 = inlined_call_operand.vmem [shape: f32[8,128], index: 3, kind: output, shape index: {}, may-alias: {0,3}]
  %s4 = sld [smem:[#allocation0]]
  $region22: #{_encoder_forward.11} parent=0
    _
  %s6 = ssub.s32 1, %s4
  %s7 = scalar_select 0, %s6, %s4
  // Predicated region
  $region2: #{_encoder_forward.11} parent=0 // pred_check
    _
  $region3: #{_encoder_forward.11} parent=0 // pred_check_branch
    %9 = sbr.rel (0) target = $region5
  $region4: #{_encoder_forward.11} parent=0 // pred_region
    _
  $region5: #{_encoder_forward.11} parent=0 // pred_fallthru
    _
  // Predicated region
  $region6: #{_encoder_forward.11} parent=0 // pred_check
    _
  $region7: #{_encoder_forward.11} parent=0 // pred_check_branch
    %11 = sbr.rel (0) target = $region9
  $region8: #{_encoder_forward.11} parent=0 // pred_region
    _
  $region9: #{_encoder_forward.11} parent=0 // pred_fallthru
    _
  // Predicated region
  $region10: #{_encoder_forward.11} parent=0 // pred_check
    _
  $region11: #{_encoder_forward.11} parent=0 // pred_check_branch
    %13 = sbr.rel (0) target = $region13
  $region12: #{_encoder_forward.11} parent=0 // pred_region
    _
  $region13: #{_encoder_forward.11} parent=0 // pred_fallthru
    _
  %v14 = vld [vmem:[%s0] sm:$0xff]
  %v15 = vld [vmem:[%s1] sm:$0x1]
  %v17 = vlaneseq
  %v18 = vshrl.u32 %v17, 7
  %v19 = vsub.s32 0, %v18
  %v20 = vrot.slane %v15, %v19
  %v22 = vmul.f32 %v14, %v20
  %v23 = vld [vmem:[%s2] sm:$0x1]
  %v25 = vlaneseq
  %v26 = vshrl.u32 %v25, 7
  %v27 = vsub.s32 0, %v26
  %v28 = vrot.slane %v23, %v27
  %v30 = vadd.f32 %v22, %v28
  %vm31 = vcmp.gt.f32.partialorder %v30, 0.0
  %v32 = vmul.f32 %v30, 0.01
  %v33 = vsel %vm31, %v30, %v32
  %34 = vst [vmem:[%s3] sm:$0xff] %v33
  // Predicated region
  $region14: #{_encoder_forward.11} parent=0 // pred_check
    _
  $region15: #{_encoder_forward.11} parent=0 // pred_check_branch
    %36 = sbr.rel (0) target = $region17
  $region16: #{_encoder_forward.11} parent=0 // pred_region
    _
  $region17: #{_encoder_forward.11} parent=0 // pred_fallthru
    _
  // Predicated region
  $region18: #{_encoder_forward.11} parent=0 // pred_check
    _
  $region19: #{_encoder_forward.11} parent=0 // pred_check_branch
    %38 = sbr.rel (0) target = $region21
  $region20: #{_encoder_forward.11} parent=0 // pred_region
    _
  $region21: #{_encoder_forward.11} parent=0 // pred_fallthru
    _

// kernel: _encoder_forward.10
$region0: #{_encoder_forward.10}
  #allocation0 [shape = 'u32[]', space=smem, size = 0x4, offset = 0x4, fixed_abs, tag = 'smem constant byte address 0x4 - core index']
  #allocation1 [shape = 'u32[144,128]{1,0:T(1,128)}', space=vmem, size = 0x12000, scoped, tag = 'internal scratch']
  #allocation2 [shape = 'f32[8,128]{1,0:T(8,128)}', space=vmem, size = 0x1000, scoped, tag = 'scratch operand']
  %s0 = inlined_call_operand.vmem [shape: bf16[8,256], index: 0, kind: input, shape index: {}]
  %s1 = inlined_call_operand.vmem [shape: bf16[256,128], index: 1, kind: input, shape index: {}]
  %s2 = inlined_call_operand.vmem [shape: f32[8,128], index: 2, kind: output, shape index: {0}]
  %s3 = inlined_call_operand.vmem [shape: f32[1,2,128], index: 3, kind: output, shape index: {1}]
  %4 = xla_tuple %s2, %s3
  %s5 = sld [smem:[#allocation0]]
  $region34: #{_encoder_forward.10} parent=0
    _
  %s7 = ssub.s32 1, %s5
  %s8 = scalar_select 0, %s7, %s5
  // Predicated region
  $region2: #{_encoder_forward.10} parent=0 // pred_check
    _
  $region3: #{_encoder_forward.10} parent=0 // pred_check_branch
    %10 = sbr.rel (0) target = $region5
  $region4: #{_encoder_forward.10} parent=0 // pred_region
    _
  $region5: #{_encoder_forward.10} parent=0 // pred_fallthru
    _
  // Predicated region
  $region6: #{_encoder_forward.10} parent=0 // pred_check
    _
  $region7: #{_encoder_forward.10} parent=0 // pred_check_branch
    %12 = sbr.rel (0) target = $region9
  $region8: #{_encoder_forward.10} parent=0 // pred_region
    _
  $region9: #{_encoder_forward.10} parent=0 // pred_fallthru
    _
  %p14 = scmp.eq.s32.totalorder 0, 0
  // Predicated region
  $region10: #{_encoder_forward.10} parent=0 // pred_check
    %p15 = pneg %p14
  $region11: #{_encoder_forward.10} parent=0 // pred_check_branch
    %17 = sbr.rel (%p15) target = $region13
  $region12: #{_encoder_forward.10} parent=0 // pred_region
    %18 = vst [vmem:[#allocation2] sm:$0xff] 0.0
  $region13: #{_encoder_forward.10} parent=0 // pred_fallthru
    _
  %v19 = vld [vmem:[#allocation2] sm:$0xff]
  %v20 = vld [vmem:[%s0] sm:$0xff]
  %v21 = vld [vmem:[%s1] sm:$0xf]
  %v22 = vld [vmem:[%s1 + $0x4] sm:$0xf]
  %v23 = vld [vmem:[%s1 + $0x8] sm:$0xf]
  %v24 = vld [vmem:[%s1 + $0xc] sm:$0xf]
  %v25 = vld [vmem:[%s1 + $0x10] sm:$0xf]
  %v26 = vld [vmem:[%s1 + $0x14] sm:$0xf]
  %v27 = vld [vmem:[%s1 + $0x18] sm:$0xf]
  %v28 = vld [vmem:[%s1 + $0x1c] sm:$0xf]
  %v29 = vld [vmem:[%s1 + $0x20] sm:$0xf]
  %v30 = vld [vmem:[%s1 + $0x24] sm:$0xf]
  %v31 = vld [vmem:[%s1 + $0x28] sm:$0xf]
  %v32 = vld [vmem:[%s1 + $0x2c] sm:$0xf]
  %v33 = vld [vmem:[%s1 + $0x30] sm:$0xf]
  %v34 = vld [vmem:[%s1 + $0x34] sm:$0xf]
  %v35 = vld [vmem:[%s1 + $0x38] sm:$0xf]
  %v36 = vld [vmem:[%s1 + $0x3c] sm:$0xf]
  %v37 = vld [vmem:[%s1 + $0x40] sm:$0xf]
  %v38 = vld [vmem:[%s1 + $0x44] sm:$0xf]
  %v39 = vld [vmem:[%s1 + $0x48] sm:$0xf]
  %v40 = vld [vmem:[%s1 + $0x4c] sm:$0xf]
  %v41 = vld [vmem:[%s1 + $0x50] sm:$0xf]
  %v42 = vld [vmem:[%s1 + $0x54] sm:$0xf]
  %v43 = vld [vmem:[%s1 + $0x58] sm:$0xf]
  %v44 = vld [vmem:[%s1 + $0x5c] sm:$0xf]
  %v45 = vld [vmem:[%s1 + $0x60] sm:$0xf]
  %v46 = vld [vmem:[%s1 + $0x64] sm:$0xf]
  %v47 = vld [vmem:[%s1 + $0x68] sm:$0xf]
  %v48 = vld [vmem:[%s1 + $0x6c] sm:$0xf]
  %v49 = vld [vmem:[%s1 + $0x70] sm:$0xf]
  %v50 = vld [vmem:[%s1 + $0x74] sm:$0xf]
  %v51 = vld [vmem:[%s1 + $0x78] sm:$0xf]
  %v52 = vld [vmem:[%s1 + $0x7c] sm:$0xf]
  %v54 = vunpack.c.l.b16 %v20
  %v55 = vunpack.c.h.b16 %v20
  %v56 = vpack.c.b16 %v54, %v54
  %v57 = vpack.c.b16 %v55, %v55
  %v92 = vunpack.c.l.b16 %v21
  %v93 = vunpack.c.l.b16 %v22
  %v94 = vunpack.c.l.b16 %v23
  %v95 = vunpack.c.l.b16 %v24
  %v96 = vunpack.c.l.b16 %v25
  %v97 = vunpack.c.l.b16 %v26
  %v98 = vunpack.c.l.b16 %v27
  %v99 = vunpack.c.l.b16 %v28
  %v100 = vunpack.c.l.b16 %v29
  %v101 = vunpack.c.l.b16 %v30
  %v102 = vunpack.c.l.b16 %v31
  %v103 = vunpack.c.l.b16 %v32
  %v104 = vunpack.c.l.b16 %v33
  %v105 = vunpack.c.l.b16 %v34
  %v106 = vunpack.c.l.b16 %v35
  %v107 = vunpack.c.l.b16 %v36
  %v108 = vunpack.c.l.b16 %v37
  %v109 = vunpack.c.l.b16 %v38
  %v110 = vunpack.c.l.b16 %v39
  %v111 = vunpack.c.l.b16 %v40
  %v112 = vunpack.c.l.b16 %v41
  %v113 = vunpack.c.l.b16 %v42
  %v114 = vunpack.c.l.b16 %v43
  %v115 = vunpack.c.l.b16 %v44
  %v116 = vunpack.c.l.b16 %v45
  %v117 = vunpack.c.l.b16 %v46
  %v118 = vunpack.c.l.b16 %v47
  %v119 = vunpack.c.l.b16 %v48
  %v120 = vunpack.c.l.b16 %v49
  %v121 = vunpack.c.l.b16 %v50
  %v122 = vunpack.c.l.b16 %v51
  %v123 = vunpack.c.l.b16 %v52
  %v124 = vpack.c.b16 %v93, %v92
  %v125 = vpack.c.b16 %v95, %v94
  %v126 = vpack.c.b16 %v97, %v96
  %v127 = vpack.c.b16 %v99, %v98
  %v128 = vpack.c.b16 %v101, %v100
  %v129 = vpack.c.b16 %v103, %v102
  %v130 = vpack.c.b16 %v105, %v104
  %v131 = vpack.c.b16 %v107, %v106
  %v132 = vpack.c.b16 %v109, %v108
  %v133 = vpack.c.b16 %v111, %v110
  %v134 = vpack.c.b16 %v113, %v112
  %v135 = vpack.c.b16 %v115, %v114
  %v136 = vpack.c.b16 %v117, %v116
  %v137 = vpack.c.b16 %v119, %v118
  %v138 = vpack.c.b16 %v121, %v120
  %v139 = vpack.c.b16 %v123, %v122
  %156 = vmatprep.subr.bf16.mxu0 0
  %157 = vmatpush1.bf16.msra.mxu0 %v131
  %158 = vmatprep.subr.bf16.mxu0 0
  %159 = vmatpush1.bf16.msra.mxu0 %v130
  %160 = vmatprep.subr.bf16.mxu0 0
  %161 = vmatpush1.bf16.msra.mxu0 %v129
  %162 = vmatprep.subr.bf16.mxu0 0
  %163 = vmatpush1.bf16.msra.mxu0 %v128
  %164 = vmatprep.subr.bf16.mxu0 0
  %165 = vmatpush1.bf16.msra.mxu0 %v127
  %166 = vmatprep.subr.bf16.mxu0 0
  %167 = vmatpush1.bf16.msra.mxu0 %v126
  %168 = vmatprep.subr.bf16.mxu0 0
  %169 = vmatpush1.bf16.msra.mxu0 %v125
  %170 = vmatprep.subr.bf16.mxu0 0
  %171 = vmatpush1.bf16.msra.mxu0 %v124
  %172 = vmatprep.subr.bf16.mxu0 0
  %173 = vmatpush2.bf16.msra.mxu0 %v139
  %174 = vmatprep.subr.bf16.mxu0 0
  %175 = vmatpush2.bf16.msra.mxu0 %v138
  %176 = vmatprep.subr.bf16.mxu0 0
  %177 = vmatpush2.bf16.msra.mxu0 %v137
  %178 = vmatprep.subr.bf16.mxu0 0
  %179 = vmatpush2.bf16.msra.mxu0 %v136
  %180 = vmatprep.subr.bf16.mxu0 0
  %181 = vmatpush2.bf16.msra.mxu0 %v135
  %182 = vmatprep.subr.bf16.mxu0 0
  %183 = vmatpush2.bf16.msra.mxu0 %v134
  %184 = vmatprep.subr.bf16.mxu0 0
  %185 = vmatpush2.bf16.msra.mxu0 %v133
  %186 = vmatprep.subr.bf16.mxu0 0
  %187 = vmatpush2.bf16.msra.mxu0 %v132
  %188 = vmatprep.mubr.bf16.mxu0 %v57
  %189 = vmatmul.mubr.bf16.gmra.mxu0 %v56
  %v190 = vpop.f32.mrf.mxu0
  %v191 = vadd.f32 0.0, %v190
  %v192 = vpop.f32.mrf.mxu0
  %v193 = vpop.f32.mrf.mxu0
  %v194 = vpop.f32.mrf.mxu0
  %195 = vdwg.mxu0
  %v196 = vadd.f32 %v19, %v191
  %197 = vst [vmem:[#allocation2] sm:$0xff] %v196
  // Predicated region
  $region14: #{_encoder_forward.10} parent=0 // pred_check
    %p198 = pneg %p14
  $region15: #{_encoder_forward.10} parent=0 // pred_check_branch
    %200 = sbr.rel (%p198) target = $region17
  $region16: #{_encoder_forward.10} parent=0 // pred_region
    %v201 = vld [vmem:[#allocation2] sm:$0xff]
    %202 = vst [vmem:[%s2] sm:$0xff] %v201
    %v203 = vrot.slane %v201, 4
    %v204 = vadd.f32 %v201, %v203
    %v205 = vrot.slane %v204, 2
    %v206 = vadd.f32 %v204, %v205
    %v207 = vrot.slane %v206, 1
    %v208 = vadd.f32 %v206, %v207
    %209 = vst [vmem:[%s3] sm:$0x1] %v208
    %v210 = vmul.f32 %v201, %v201
    %v211 = vrot.slane %v210, 4
    %v212 = vadd.f32 %v210, %v211
    %v213 = vrot.slane %v212, 2
    %v214 = vadd.f32 %v212, %v213
    %v215 = vrot.slane %v214, 1
    %v216 = vadd.f32 %v214, %v215
    %217 = vst [vmem:[%s3 + $0x1] sm:$0x1] %v216
  $region17: #{_encoder_forward.10} parent=0 // pred_fallthru
    _
  // Predicated region
  $region18: #{_encoder_forward.10} parent=0 // pred_check
    _
  $region19: #{_encoder_forward.10} parent=0 // pred_check_branch
    %219 = sbr.rel (0) target = $region21
  $region20: #{_encoder_forward.10} parent=0 // pred_region
    _
  $region21: #{_encoder_forward.10} parent=0 // pred_fallthru
    _
  // Predicated region
  $region22: #{_encoder_forward.10} parent=0 // pred_check
    _
  $region23: #{_encoder_forward.10} parent=0 // pred_check_branch
    %221 = sbr.rel (0) target = $region25
  $region24: #{_encoder_forward.10} parent=0 // pred_region
    _
  $region25: #{_encoder_forward.10} parent=0 // pred_fallthru
    _
  // Predicated region
  $region26: #{_encoder_forward.10} parent=0 // pred_check
    _
  $region27: #{_encoder_forward.10} parent=0 // pred_check_branch
    %223 = sbr.rel (0) target = $region29
  $region28: #{_encoder_forward.10} parent=0 // pred_region
    _
  $region29: #{_encoder_forward.10} parent=0 // pred_fallthru
    _
  // Predicated region
  $region30: #{_encoder_forward.10} parent=0 // pred_check
    _
  $region31: #{_encoder_forward.10} parent=0 // pred_check_branch
    %225 = sbr.rel (0) target = $region33
  $region32: #{_encoder_forward.10} parent=0 // pred_region
    _
  $region33: #{_encoder_forward.10} parent=0 // pred_fallthru
    _

</llo_original>
